<compile_context>
chip_gen: v5e
topology: v5e:2x2
jax: 0.10.0
libtpu: 0.0.40
codegen_flags: <defaults>
</compile_context>

<pallas_src>
import functools

import numpy as np
import jax
import jax.numpy as jnp
from jax.experimental import pallas as pl
from jax.experimental.pallas import tpu as pltpu


def _moe_kernel(gate_ref, x_ref, wg_ref, bg_ref, o_ref, *, eb, n_out):
    """One batch tile x one expert group.

    gate_ref: (1, tm, eb)    f32 gate columns for this expert group
    x_ref:    (tm, m)        compute-dtype activations (resident across groups)
    wg_ref:   (m, eb*n)      packed expert weights for this group
    bg_ref:   (1, eb*n)      packed expert biases (f32)
    o_ref:    (tm, n)        f32 output block (resident across groups)
    """
    e = pl.program_id(1)

    # One wide MXU pass for all `eb` experts in the group (f32 accumulation).
    y = jnp.dot(x_ref[...], wg_ref[...], preferred_element_type=jnp.float32)
    y = y + bg_ref[...]                                   # (tm, eb*n)

    g = gate_ref[0]                                       # (tm, eb) f32
    contrib = g[:, 0:1] * y[:, 0:n_out]
    for j in range(1, eb):                                # static unroll, eb is tiny
        contrib = contrib + g[:, j:j + 1] * y[:, j * n_out:(j + 1) * n_out]

    @pl.when(e == 0)
    def _init():                                          # first group: overwrite
        o_ref[...] = contrib

    @pl.when(e > 0)
    def _accumulate():                                    # later groups: add
        o_ref[...] += contrib


def _pick_experts_per_step(E, m, n, itemsize, weight_budget_bytes=8 << 20):
    """Largest divisor of E whose packed, double-buffered (m, eb*n) weight block
    fits the budget and stays lane-dense (eb*n % 128 == 0 unless eb == E)."""
    legal = [eb for eb in range(1, E + 1)
             if E % eb == 0 and (eb == E or (eb * n) % 128 == 0)]
    fitting = [eb for eb in legal if 2 * m * eb * n * itemsize <= weight_budget_bytes]
    # TODO(synk): if even the smallest legal group overflows VMEM (huge m*n),
    # add an N-tiling grid axis over the expert output dim instead.
    return max(fitting) if fitting else min(legal)


def _pick_tile_m(M, m, n, eb, comp_itemsize, budget_bytes=40 << 20):
    """Largest 128-ish batch tile that fits VMEM; prefer >= 2 tiles so the
    'parallel' axis can engage both TensorCores on v7x."""
    fixed = 2 * (m * eb * n * comp_itemsize + eb * n * 4)   # weights + biases (dbl-buf)

    def fits(t):
        per_tile = 2 * (t * m * comp_itemsize + t * eb * 4 + t * n * 4)
        return fixed + per_tile <= budget_bytes

    candidates = (1024, 512, 256, 128, 64, 32, 16, 8)
    for t in candidates:
        if M % t == 0 and M // t >= 2 and fits(t):
            return t
    for t in candidates:
        if M % t == 0 and fits(t):
            return t
    return M  # small / odd batch: single full-extent block


def _vmem_limit_bytes(tm, m, n, eb, comp_itemsize):
    need = 2 * (tm * m * comp_itemsize          # x block (double-buffered)
                + m * eb * n * comp_itemsize    # packed expert weights
                + eb * n * 4                    # packed expert biases
                + tm * eb * 4                   # gate group block
                + tm * n * 4)                   # output block
    need += 4 << 20                             # compiler-internal scratch headroom
    try:
        # Generation-aware cap: v7x has 64 MiB/TC vs 128 MiB on v5e/v6e.
        cap = (pltpu.get_tpu_info().vmem_capacity_bytes * 3) // 4
    except Exception:
        cap = 48 << 20
    return int(min(max(need, 32 << 20), max(cap, 32 << 20)))


def moe_forward(x, w1, b1, w2, b2, w_experts, b_experts, *,
                compute_dtype=jnp.bfloat16):
    """Fused MOE forward.

    x:         (M, m) float32
    w1, b1:    (m, H), (1, H)      decider layer 1 (pre-transposed to (in, out))
    w2, b2:    (H, E), (1, E)      decider layer 2
    w_experts: (E, m, n)           stacked expert weights (pre-transposed)
    b_experts: (E, 1, n)           stacked expert biases
    returns:   (M, n) float32
    """
    M, m = x.shape
    H = w1.shape[1]
    E, m2, n = w_experts.shape
    assert w1.shape == (m, H) and b1.shape == (1, H)
    assert w2.shape == (H, E) and b2.shape == (1, E)
    assert m2 == m and b_experts.shape == (E, 1, n)

    # ---- Decider hoisted out of the kernel: tiny, MXU-hostile, f32 ---------
    xf = x.astype(jnp.float32)
    h = jnp.maximum(xf @ w1.astype(jnp.float32) + b1, 0.0)
    logits = h @ w2.astype(jnp.float32) + b2
    gate = jax.nn.softmax(logits, axis=-1)                      # (M, E) f32

    comp_itemsize = jnp.dtype(compute_dtype).itemsize
    eb = _pick_experts_per_step(E, m, n, comp_itemsize)
    n_groups = E // eb
    tm = _pick_tile_m(M, m, n, eb, comp_itemsize)
    n_batch_tiles = M // tm

    # Gate laid out per expert group so the kernel uses static lane slices.
    gate_g = jnp.transpose(gate.reshape(M, n_groups, eb), (1, 0, 2))  # (G, M, eb)

    # Expert weights packed column-wise: w_all[:, k*n:(k+1)*n] == W_k.
    w_all = jnp.transpose(w_experts, (1, 0, 2)).reshape(m, E * n).astype(compute_dtype)
    b_all = jnp.transpose(b_experts, (1, 0, 2)).reshape(1, E * n).astype(jnp.float32)
    xc = x.astype(compute_dtype)

    grid = (n_batch_tiles, n_groups)

    cost = pl.CostEstimate(
        flops=2 * M * m * E * n + 3 * M * E * n,
        transcendentals=0,
        bytes_accessed=(M * m * comp_itemsize                           # x, once per tile
                        + n_batch_tiles * E * m * n * comp_itemsize     # weights re-streamed
                        + n_batch_tiles * E * n * 4                     # biases re-streamed
                        + M * E * 4                                     # gate
                        + M * n * 4),                                   # output
    )

    kernel = functools.partial(_moe_kernel, eb=eb, n_out=n)

    return pl.pallas_call(
        kernel,
        out_shape=jax.ShapeDtypeStruct((M, n), jnp.float32),
        grid_spec=pltpu.PrefetchScalarGridSpec(
            num_scalar_prefetch=0,
            grid=grid,
            in_specs=[
                pl.BlockSpec((1, tm, eb), lambda i, e: (e, i, 0)),    # gate group
                pl.BlockSpec((tm, m), lambda i, e: (i, 0)),           # x (resident over e)
                pl.BlockSpec((m, eb * n), lambda i, e: (0, e)),       # packed expert W
                pl.BlockSpec((1, eb * n), lambda i, e: (0, e)),       # packed expert b
            ],
            out_specs=pl.BlockSpec((tm, n), lambda i, e: (i, 0)),
        ),
        compiler_params=pltpu.CompilerParams(
            dimension_semantics=("parallel", "arbitrary"),
            vmem_limit_bytes=_vmem_limit_bytes(tm, m, n, eb, comp_itemsize),
        ),
        cost_estimate=cost,
    )(gate_g, xc, w_all, b_all)


def _softmax_np(z):
    z = z - z.max(axis=1, keepdims=True)
    ez = np.exp(z)
    return ez / ez.sum(axis=1, keepdims=True)


if __name__ == "__main__":
    # Small, TPU-friendly shapes: 128-aligned in/out features, lane-dense N.
    batch = 256        # M
    m = 128            # in_features
    n = 128            # out_features per expert
    hidden = 256       # decider hidden width (matches nn.Linear(m, 256))
    n_experts = 8

    key = jax.random.PRNGKey(0)
    ks = jax.random.split(key, 7)

    def uniform(k, shape, bound):
        return jax.random.uniform(k, shape, jnp.float32, -bound, bound)

    bound_m = 1.0 / (m ** 0.5)       # torch.nn.Linear default init, fan_in = m
    bound_h = 1.0 / (hidden ** 0.5)  # fan_in = hidden

    w1 = uniform(ks[0], (m, hidden), bound_m)
    b1 = uniform(ks[1], (1, hidden), bound_m)
    w2 = uniform(ks[2], (hidden, n_experts), bound_h)
    b2 = uniform(ks[3], (1, n_experts), bound_h)
    w_experts = uniform(ks[4], (n_experts, m, n), bound_m)
    b_experts = uniform(ks[5], (n_experts, 1, n), bound_m)
    x = jax.random.normal(ks[6], (batch, m), dtype=jnp.float32)

    moe = jax.jit(moe_forward, static_argnames=("compute_dtype",))

    y_f32 = jax.block_until_ready(
        moe(x, w1, b1, w2, b2, w_experts, b_experts, compute_dtype=jnp.float32))
    y_bf16 = jax.block_until_ready(
        moe(x, w1, b1, w2, b2, w_experts, b_experts, compute_dtype=jnp.bfloat16))

    # Pure-numpy float64 reference (same math as the PyTorch module).
    xn = np.asarray(x, np.float64)
    w1n, b1n = np.asarray(w1, np.float64), np.asarray(b1, np.float64)
    w2n, b2n = np.asarray(w2, np.float64), np.asarray(b2, np.float64)
    wen, ben = np.asarray(w_experts, np.float64), np.asarray(b_experts, np.float64)

    hh = np.maximum(xn @ w1n + b1n, 0.0)
    gate_ref = _softmax_np(hh @ w2n + b2n)                   # (B, E)
    expert_out = np.einsum("bm,emn->ebn", xn, wen) + ben     # (E, B, n)
    y_ref = np.einsum("be,ebn->bn", gate_ref, expert_out)    # (B, n)

    # f32 path: tight check of the exact semantics.
    np.testing.assert_allclose(np.asarray(y_f32), y_ref.astype(np.float32),
                               rtol=5e-4, atol=5e-4)
    # bf16 path (default): looser tolerance (bf16 MXU inputs, f32 accumulation).
    np.testing.assert_allclose(np.asarray(y_bf16), y_ref.astype(np.float32),
                               rtol=5e-2, atol=5e-2)

    print("KERNEL_OK")
</pallas_src>

<mosaic_0001>
module attributes {stable_mosaic.version = 11 : i64} {
  func.func @_moe_kernel(%arg0: i32, %arg1: i32, %arg2: memref<1x128x8xf32, #tpu.memory_space<vmem>>, %arg3: memref<128x128xf32, #tpu.memory_space<vmem>>, %arg4: memref<128x1024xf32, #tpu.memory_space<vmem>>, %arg5: memref<1x1024xf32, #tpu.memory_space<vmem>>, %arg6: memref<128x128xf32, #tpu.memory_space<vmem>>) attributes {dimension_semantics = [#tpu.dimension_semantics<parallel>, #tpu.dimension_semantics<arbitrary>], iteration_bounds = array<i64: 2, 1>, scalar_prefetch = 0 : i64, scratch_operands = 0 : i64, tpu.core_type = #tpu.core_type<tc>, window_params = [{transform_indices = @transform_0, window_bounds = array<i64: 1, 128, 8>}, {transform_indices = @transform_1, window_bounds = array<i64: 128, 128>}, {transform_indices = @transform_2, window_bounds = array<i64: 128, 1024>}, {transform_indices = @transform_3, window_bounds = array<i64: 1, 1024>}, {transform_indices = @transform_4, window_bounds = array<i64: 128, 128>}]} {
    %c0 = arith.constant 0 : index
    %c0_0 = arith.constant 0 : index
    %0 = vector.load %arg3[%c0, %c0_0] : memref<128x128xf32, #tpu.memory_space<vmem>>, vector<128x128xf32>
    %c0_1 = arith.constant 0 : index
    %c0_2 = arith.constant 0 : index
    %1 = vector.load %arg4[%c0_1, %c0_2] : memref<128x1024xf32, #tpu.memory_space<vmem>>, vector<128x1024xf32>
    %cst = arith.constant dense<0.000000e+00> : vector<128x1024xf32>
    %2 = tpu.matmul %0, %1, %cst {dimension_numbers = #tpu.dot_dimension_numbers<[1], [0], [0], [1], [0, 0, 1, 1], [], []>} : vector<128x128xf32>, vector<128x1024xf32>, vector<128x1024xf32> -> vector<128x1024xf32>
    %c0_3 = arith.constant 0 : index
    %c0_4 = arith.constant 0 : index
    %3 = vector.load %arg5[%c0_3, %c0_4] : memref<1x1024xf32, #tpu.memory_space<vmem>>, vector<1x1024xf32>
    %4 = vector.broadcast %3 : vector<1x1024xf32> to vector<128x1024xf32>
    %5 = arith.addf %2, %4 : vector<128x1024xf32>
    %c0_5 = arith.constant 0 : index
    %c0_6 = arith.constant 0 : index
    %c0_7 = arith.constant 0 : index
    %6 = vector.load %arg2[%c0_5, %c0_6, %c0_7] : memref<1x128x8xf32, #tpu.memory_space<vmem>>, vector<1x128x8xf32>
    %7 = vector.shape_cast %6 : vector<1x128x8xf32> to vector<128x8xf32>
    %8 = vector.extract_strided_slice %7 {offsets = [0, 0], sizes = [128, 1], strides = [1, 1]} : vector<128x8xf32> to vector<128x1xf32>
    %9 = vector.extract_strided_slice %5 {offsets = [0, 0], sizes = [128, 128], strides = [1, 1]} : vector<128x1024xf32> to vector<128x128xf32>
    %10 = vector.broadcast %8 : vector<128x1xf32> to vector<128x128xf32>
    %11 = arith.mulf %10, %9 : vector<128x128xf32>
    %12 = vector.extract_strided_slice %7 {offsets = [0, 1], sizes = [128, 1], strides = [1, 1]} : vector<128x8xf32> to vector<128x1xf32>
    %13 = vector.extract_strided_slice %5 {offsets = [0, 128], sizes = [128, 128], strides = [1, 1]} : vector<128x1024xf32> to vector<128x128xf32>
    %14 = vector.broadcast %12 : vector<128x1xf32> to vector<128x128xf32>
    %15 = arith.mulf %14, %13 : vector<128x128xf32>
    %16 = arith.addf %11, %15 : vector<128x128xf32>
    %17 = vector.extract_strided_slice %7 {offsets = [0, 2], sizes = [128, 1], strides = [1, 1]} : vector<128x8xf32> to vector<128x1xf32>
    %18 = vector.extract_strided_slice %5 {offsets = [0, 256], sizes = [128, 128], strides = [1, 1]} : vector<128x1024xf32> to vector<128x128xf32>
    %19 = vector.broadcast %17 : vector<128x1xf32> to vector<128x128xf32>
    %20 = arith.mulf %19, %18 : vector<128x128xf32>
    %21 = arith.addf %16, %20 : vector<128x128xf32>
    %22 = vector.extract_strided_slice %7 {offsets = [0, 3], sizes = [128, 1], strides = [1, 1]} : vector<128x8xf32> to vector<128x1xf32>
    %23 = vector.extract_strided_slice %5 {offsets = [0, 384], sizes = [128, 128], strides = [1, 1]} : vector<128x1024xf32> to vector<128x128xf32>
    %24 = vector.broadcast %22 : vector<128x1xf32> to vector<128x128xf32>
    %25 = arith.mulf %24, %23 : vector<128x128xf32>
    %26 = arith.addf %21, %25 : vector<128x128xf32>
    %27 = vector.extract_strided_slice %7 {offsets = [0, 4], sizes = [128, 1], strides = [1, 1]} : vector<128x8xf32> to vector<128x1xf32>
    %28 = vector.extract_strided_slice %5 {offsets = [0, 512], sizes = [128, 128], strides = [1, 1]} : vector<128x1024xf32> to vector<128x128xf32>
    %29 = vector.broadcast %27 : vector<128x1xf32> to vector<128x128xf32>
    %30 = arith.mulf %29, %28 : vector<128x128xf32>
    %31 = arith.addf %26, %30 : vector<128x128xf32>
    %32 = vector.extract_strided_slice %7 {offsets = [0, 5], sizes = [128, 1], strides = [1, 1]} : vector<128x8xf32> to vector<128x1xf32>
    %33 = vector.extract_strided_slice %5 {offsets = [0, 640], sizes = [128, 128], strides = [1, 1]} : vector<128x1024xf32> to vector<128x128xf32>
    %34 = vector.broadcast %32 : vector<128x1xf32> to vector<128x128xf32>
    %35 = arith.mulf %34, %33 : vector<128x128xf32>
    %36 = arith.addf %31, %35 : vector<128x128xf32>
    %37 = vector.extract_strided_slice %7 {offsets = [0, 6], sizes = [128, 1], strides = [1, 1]} : vector<128x8xf32> to vector<128x1xf32>
    %38 = vector.extract_strided_slice %5 {offsets = [0, 768], sizes = [128, 128], strides = [1, 1]} : vector<128x1024xf32> to vector<128x128xf32>
    %39 = vector.broadcast %37 : vector<128x1xf32> to vector<128x128xf32>
    %40 = arith.mulf %39, %38 : vector<128x128xf32>
    %41 = arith.addf %36, %40 : vector<128x128xf32>
    %42 = vector.extract_strided_slice %7 {offsets = [0, 7], sizes = [128, 1], strides = [1, 1]} : vector<128x8xf32> to vector<128x1xf32>
    %43 = vector.extract_strided_slice %5 {offsets = [0, 896], sizes = [128, 128], strides = [1, 1]} : vector<128x1024xf32> to vector<128x128xf32>
    %44 = vector.broadcast %42 : vector<128x1xf32> to vector<128x128xf32>
    %45 = arith.mulf %44, %43 : vector<128x128xf32>
    %46 = arith.addf %41, %45 : vector<128x128xf32>
    %c0_i32 = arith.constant 0 : i32
    %47 = arith.cmpi eq, %arg1, %c0_i32 : i32
    %48 = arith.extui %47 : i1 to i32
    %c0_i32_8 = arith.constant 0 : i32
    %49 = arith.cmpi ne, %48, %c0_i32_8 : i32
    scf.if %49 {
      %c0_11 = arith.constant 0 : index
      %c0_12 = arith.constant 0 : index
      %53 = vector.load %arg6[%c0_11, %c0_12] : memref<128x128xf32, #tpu.memory_space<vmem>>, vector<128x128xf32>
      tpu.vector_store %arg6[%c0_11, %c0_12], %46 {strides = array<i32>} : memref<128x128xf32, #tpu.memory_space<vmem>>, vector<128x128xf32>,
    } else {
    }
    %c0_i32_9 = arith.constant 0 : i32
    %50 = arith.cmpi sgt, %arg1, %c0_i32_9 : i32
    %51 = arith.extui %50 : i1 to i32
    %c0_i32_10 = arith.constant 0 : i32
    %52 = arith.cmpi ne, %51, %c0_i32_10 : i32
    scf.if %52 {
      %c0_11 = arith.constant 0 : index
      %c0_12 = arith.constant 0 : index
      %53 = vector.load %arg6[%c0_11, %c0_12] : memref<128x128xf32, #tpu.memory_space<vmem>>, vector<128x128xf32>
      %54 = arith.addf %53, %46 : vector<128x128xf32>
      %c0_13 = arith.constant 0 : index
      %c0_14 = arith.constant 0 : index
      %55 = vector.load %arg6[%c0_13, %c0_14] : memref<128x128xf32, #tpu.memory_space<vmem>>, vector<128x128xf32>
      tpu.vector_store %arg6[%c0_13, %c0_14], %54 {strides = array<i32>} : memref<128x128xf32, #tpu.memory_space<vmem>>, vector<128x128xf32>,
    } else {
    }
    return
  }
  func.func @transform_0(%arg0: i32, %arg1: i32) -> (i32, i32, i32) {
    %c0_i32 = arith.constant 0 : i32
    %c0_i32_0 = arith.constant 0 : i32
    return %arg1, %arg0, %c0_i32 : i32, i32, i32
  }
  func.func @transform_1(%arg0: i32, %arg1: i32) -> (i32, i32) {
    %c0_i32 = arith.constant 0 : i32
    %c0_i32_0 = arith.constant 0 : i32
    return %arg0, %c0_i32 : i32, i32
  }
  func.func @transform_2(%arg0: i32, %arg1: i32) -> (i32, i32) {
    %c0_i32 = arith.constant 0 : i32
    %c0_i32_0 = arith.constant 0 : i32
    return %c0_i32, %arg1 : i32, i32
  }
  func.func @transform_3(%arg0: i32, %arg1: i32) -> (i32, i32) {
    %c0_i32 = arith.constant 0 : i32
    %c0_i32_0 = arith.constant 0 : i32
    return %c0_i32, %arg1 : i32, i32
  }
  func.func @transform_4(%arg0: i32, %arg1: i32) -> (i32, i32) {
    %c0_i32 = arith.constant 0 : i32
    %c0_i32_0 = arith.constant 0 : i32
    return %arg0, %c0_i32 : i32, i32
  }
}

</mosaic_0001>

<llo_original>
// kernel: moe_forward.1
$region0: #{moe_forward.1}
  #allocation0 [shape = 'u32[]', space=smem, size = 0x4, offset = 0x4, fixed_abs, tag = 'smem constant byte address 0x4 - core index']
  #allocation1 [shape = 'u32[72,128]{1,0:T(1,128)}', space=vmem, size = 0x9000, scoped, tag = 'internal scratch']
  %s0 = inlined_call_operand.vmem [shape: f32[1,256,8], index: 0, kind: input, shape index: {}]
  %s1 = inlined_call_operand.vmem [shape: f32[256,128], index: 1, kind: input, shape index: {}]
  %s2 = inlined_call_operand.vmem [shape: f32[128,1024], index: 2, kind: input, shape index: {}]
  %s3 = inlined_call_operand.vmem [shape: f32[1,1024], index: 3, kind: input, shape index: {}]
  %s4 = inlined_call_operand.hbm [shape: f32[256,128], index: 4, kind: output, shape index: {}]
  %s5 = sld [smem:[#allocation0]]
  $region57: #{moe_forward.1} parent=0
    _
  %s7 = ssub.s32 1, %s5
  %s8 = scalar_select 0, %s7, %s5
  $region1: #{moe_forward.1} parent=0
    #allocation2 [shape = 'u8[131072]{0}', space=vmem, size = 0x20000, scoped, tag = 'output window, operand 0']
    #allocation3 [shape = 's32[2]{0}', space=sflag, size = 0x8, scoped, tag = 'scoped memory for moe_forward.1']
    %9 = vsyncpa [#allocation3], 0
    %s10 = scalar_lea.sflag [#allocation3], 1
    %11 = vsyncpa %s10, 0
    loop: start=0, step=1, limit=4
    $region2: #{moe_forward.1} parent=1 // loop_pre_header
      _
    $region3: #{moe_forward.1} parent=1 // loop_header
      %s13 = sphi 0, %s17
      %p14 = scmp.ge.s32.totalorder %s13, 4
      %s20 = sphi 0, %s32
      %s21 = sphi 0, %s28
      %s22 = sphi 0, %s20
      %s23 = sphi 0, %s21
      %s24 = sphi 0, %s22
      %s25 = sphi 0, %s23
      %s37 = sphi 0, %s39
      %s40 = sphi 0, %s37
      %s41 = sphi 0, %s40
      %s57 = sphi 0, %s41
      %s63 = sphi 0, %s65
      %s66 = sphi 0, %s63
      %s67 = sphi 0, %s66
      %s83 = sphi 0, %s67
      %s89 = sphi 0, %s91
      %s92 = sphi 0, %s89
      %s93 = sphi 0, %s92
      %s109 = sphi 0, %s93
      %s115 = sphi 0, %s117
      %s118 = sphi 0, %s115
      %s119 = sphi 0, %s118
      %s135 = sphi 0, %s119
      %s141 = sphi 0, %s143
      %s144 = sphi 0, %s141
      %s145 = sphi 0, %s144
      %s161 = sphi 0, %s145
    $region4: #{moe_forward.1} parent=1 // loop_header_branch
      %16 = sbr.rel (%p14) target = $region8
    $region5: #{moe_forward.1} parent=1 // loop_body
      %s18 = ssub.s32 %s13, 1
      %s19 = ssub.s32 %s13, 2
      %s26 = sadd.s32 1, %s21
      %p27 = scmp.ge.s32.totalorder %s26, 1
      %s28 = scalar_select %p27, 0, %s26
      %s29 = sadd.s32 1, %s20
      %s30 = scalar_select %p27, %s29, %s20
      %p31 = scmp.ge.s32.totalorder %s30, 2
      %s32 = scalar_select %p31, 0, %s30
      %s33 = ssub.s32 %s21, %s28
      %s34 = ssub.s32 %s20, %s32
      %s35 = sor.u32 %s33, %s34
      %p36 = scmp.eq.s32.totalorder %s35, 0
      %s38 = sadd.s32 %s37, 1
      %s39 = scalar_select %p36, %s37, %s38
      %p42 = pneg %p36
      %p43 = scmp.eq.s32.totalorder %s13, 1
      %p44 = por %p42, %p43
      %p45 = scmp.ne.s32.totalorder %s37, %s40
      %p46 = scmp.eq.s32.totalorder %s13, 0
      %p47 = por %p45, %p46
      %p48 = scmp.ne.s32.totalorder %s37, %s40
      %p49 = scmp.eq.s32.totalorder %s18, 1
      %p50 = por %p48, %p49
      %p51 = scmp.ne.s32.totalorder %s40, %s41
      %p52 = scmp.eq.s32.totalorder %s18, 0
      %p53 = por %p51, %p52
      %p54 = scmp.ne.s32.totalorder %s40, %s41
      %p55 = scmp.eq.s32.totalorder %s19, 1
      %p56 = por %p54, %p55
      %p58 = scmp.ne.s32.totalorder %s41, %s57
      %p59 = scmp.eq.s32.totalorder %s19, 0
      %p60 = por %p58, %p59
      %s61 = ssub.s32 %s20, %s32
      %p62 = scmp.eq.s32.totalorder %s61, 0
      %s64 = sadd.s32 %s63, 1
      %s65 = scalar_select %p62, %s63, %s64
      %p68 = pneg %p62
      %p69 = scmp.eq.s32.totalorder %s13, 1
      %p70 = por %p68, %p69
      %p71 = scmp.ne.s32.totalorder %s63, %s66
      %p72 = scmp.eq.s32.totalorder %s13, 0
      %p73 = por %p71, %p72
      %p74 = scmp.ne.s32.totalorder %s63, %s66
      %p75 = scmp.eq.s32.totalorder %s18, 1
      %p76 = por %p74, %p75
      %p77 = scmp.ne.s32.totalorder %s66, %s67
      %p78 = scmp.eq.s32.totalorder %s18, 0
      %p79 = por %p77, %p78
      %p80 = scmp.ne.s32.totalorder %s66, %s67
      %p81 = scmp.eq.s32.totalorder %s19, 1
      %p82 = por %p80, %p81
      %p84 = scmp.ne.s32.totalorder %s67, %s83
      %p85 = scmp.eq.s32.totalorder %s19, 0
      %p86 = por %p84, %p85
      %s87 = ssub.s32 %s21, %s28
      %p88 = scmp.eq.s32.totalorder %s87, 0
      %s90 = sadd.s32 %s89, 1
      %s91 = scalar_select %p88, %s89, %s90
      %p94 = pneg %p88
      %p95 = scmp.eq.s32.totalorder %s13, 1
      %p96 = por %p94, %p95
      %p97 = scmp.ne.s32.totalorder %s89, %s92
      %p98 = scmp.eq.s32.totalorder %s13, 0
      %p99 = por %p97, %p98
      %p100 = scmp.ne.s32.totalorder %s89, %s92
      %p101 = scmp.eq.s32.totalorder %s18, 1
      %p102 = por %p100, %p101
      %p103 = scmp.ne.s32.totalorder %s92, %s93
      %p104 = scmp.eq.s32.totalorder %s18, 0
      %p105 = por %p103, %p104
      %p106 = scmp.ne.s32.totalorder %s92, %s93
      %p107 = scmp.eq.s32.totalorder %s19, 1
      %p108 = por %p106, %p107
      %p110 = scmp.ne.s32.totalorder %s93, %s109
      %p111 = scmp.eq.s32.totalorder %s19, 0
      %p112 = por %p110, %p111
      %s113 = ssub.s32 %s21, %s28
      %p114 = scmp.eq.s32.totalorder %s113, 0
      %s116 = sadd.s32 %s115, 1
      %s117 = scalar_select %p114, %s115, %s116
      %p120 = pneg %p114
      %p121 = scmp.eq.s32.totalorder %s13, 1
      %p122 = por %p120, %p121
      %p123 = scmp.ne.s32.totalorder %s115, %s118
      %p124 = scmp.eq.s32.totalorder %s13, 0
      %p125 = por %p123, %p124
      %p126 = scmp.ne.s32.totalorder %s115, %s118
      %p127 = scmp.eq.s32.totalorder %s18, 1
      %p128 = por %p126, %p127
      %p129 = scmp.ne.s32.totalorder %s118, %s119
      %p130 = scmp.eq.s32.totalorder %s18, 0
      %p131 = por %p129, %p130
      %p132 = scmp.ne.s32.totalorder %s118, %s119
      %p133 = scmp.eq.s32.totalorder %s19, 1
      %p134 = por %p132, %p133
      %p136 = scmp.ne.s32.totalorder %s119, %s135
      %p137 = scmp.eq.s32.totalorder %s19, 0
      %p138 = por %p136, %p137
      %s139 = ssub.s32 %s20, %s32
      %p140 = scmp.eq.s32.totalorder %s139, 0
      %s142 = sadd.s32 %s141, 1
      %s143 = scalar_select %p140, %s141, %s142
      %p146 = pneg %p140
      %p147 = scmp.eq.s32.totalorder %s13, 1
      %p148 = por %p146, %p147
      %p149 = scmp.ne.s32.totalorder %s141, %s144
      %p150 = scmp.eq.s32.totalorder %s13, 0
      %p151 = por %p149, %p150
      %p152 = scmp.ne.s32.totalorder %s141, %s144
      %p153 = scmp.eq.s32.totalorder %s18, 1
      %p154 = por %p152, %p153
      %p155 = scmp.ne.s32.totalorder %s144, %s145
      %p156 = scmp.eq.s32.totalorder %s18, 0
      %p157 = por %p155, %p156
      %p158 = scmp.ne.s32.totalorder %s144, %s145
      %p159 = scmp.eq.s32.totalorder %s19, 1
      %p160 = por %p158, %p159
      %p162 = scmp.ne.s32.totalorder %s145, %s161
      %p163 = scmp.eq.s32.totalorder %s19, 0
      %p164 = por %p162, %p163
      %p165 = scmp.le.s32.totalorder 1, %s13
      %p166 = scmp.lt.s32.totalorder %s13, 3
      %p167 = pnand %p165, %p166
      %p168 = pneg %p167
      // Predicated region
      $region9: #{moe_forward.1} parent=5 // pred_check
        _
      $region10: #{moe_forward.1} parent=5 // pred_check_branch
        %170 = sbr.rel (%p167) target = $region12
      $region11: #{moe_forward.1} parent=5 // pred_region
        %s171 = ssub.s32 %s13, 1
        // Predicated region
        $region13: #{moe_forward.1} parent=11 // pred_check
          %p172 = pneg %p105
        $region14: #{moe_forward.1} parent=11 // pred_check_branch
          %174 = sbr.rel (%p172) target = $region16
        $region15: #{moe_forward.1} parent=11 // pred_region
          %s175 = smul.u32 8, %s23
          %p176 = scmp.lt.s32.totalorder %s175, 7
          %s177 = scalar_select %p176, %s175, 7
          %s178 = smul.addr %s177, 8
          %s179 = scalar_lea.vmem %s2, %s178
          %s180 = smul.u32 8, %s23
        $region16: #{moe_forward.1} parent=11 // pred_fallthru
          _
        // Predicated region
        $region17: #{moe_forward.1} parent=11 // pred_check
          %p181 = pneg %p131
        $region18: #{moe_forward.1} parent=11 // pred_check_branch
          %183 = sbr.rel (%p181) target = $region20
        $region19: #{moe_forward.1} parent=11 // pred_region
          %s184 = smul.u32 8, %s23
          %p185 = scmp.lt.s32.totalorder %s184, 7
          %s186 = scalar_select %p185, %s184, 7
          %s187 = scalar_lea.vmem %s3, %s186
          %s188 = smul.u32 8, %s23
        $region20: #{moe_forward.1} parent=11 // pred_fallthru
          _
      $region12: #{moe_forward.1} parent=5 // pred_fallthru
        _
      %p189 = scmp.lt.s32.totalorder %s13, 2
      // Predicated region
      $region21: #{moe_forward.1} parent=5 // pred_check
        %p190 = pneg %p189
      $region22: #{moe_forward.1} parent=5 // pred_check_branch
        %192 = sbr.rel (%p190) target = $region24
      $region23: #{moe_forward.1} parent=5 // pred_region
        // Predicated region
        $region25: #{moe_forward.1} parent=23 // pred_check
          %p193 = pneg %p47
        $region26: #{moe_forward.1} parent=23 // pred_check_branch
          %195 = sbr.rel (%p193) target = $region28
        $region27: #{moe_forward.1} parent=23 // pred_region
          %s196 = smul.u32 16, %s20
          %p197 = scmp.lt.s32.totalorder %s21, 0
          %s198 = scalar_select %p197, %s21, 0
          %p199 = scmp.lt.s32.totalorder %s196, 31
          %s200 = scalar_select %p199, %s196, 31
          %s201 = smul.addr %s198, 32
          %s202 = sadd.s32 %s200, %s201
          %s203 = smul.addr %s202, 8
          %s204 = scalar_lea.vmem %s0, %s203
          %s205 = smul.u32 16, %s20
        $region28: #{moe_forward.1} parent=23 // pred_fallthru
          _
        // Predicated region
        $region29: #{moe_forward.1} parent=23 // pred_check
          %p206 = pneg %p73
        $region30: #{moe_forward.1} parent=23 // pred_check_branch
          %208 = sbr.rel (%p206) target = $region32
        $region31: #{moe_forward.1} parent=23 // pred_region
          %s209 = smul.u32 16, %s20
          %p210 = scmp.lt.s32.totalorder %s209, 31
          %s211 = scalar_select %p210, %s209, 31
          %s212 = smul.addr %s211, 8
          %s213 = scalar_lea.vmem %s1, %s212
          %s214 = smul.u32 16, %s20
        $region32: #{moe_forward.1} parent=23 // pred_fallthru
          _
      $region24: #{moe_forward.1} parent=5 // pred_fallthru
        _
      %p215 = scmp.le.s32.totalorder 1, %s13
      %p216 = scmp.lt.s32.totalorder %s13, 3
      %p217 = pnand %p215, %p216
      %p218 = pneg %p217
      // Predicated region
      $region33: #{moe_forward.1} parent=5 // pred_check
        _
      $region34: #{moe_forward.1} parent=5 // pred_check_branch
        %220 = sbr.rel (%p217) target = $region36
      $region35: #{moe_forward.1} parent=5 // pred_region
        %s221 = ssub.s32 %s13, 1
        %s222 = smul.u32 16, %s22
        %p223 = scmp.lt.s32.totalorder %s23, 0
        %s224 = scalar_select %p223, %s23, 0
        %p225 = scmp.lt.s32.totalorder %s222, 31
        %s226 = scalar_select %p225, %s222, 31
        %s227 = smul.addr %s224, 32
        %s228 = sadd.s32 %s226, %s227
        %s229 = smul.addr %s228, 8
        %s230 = scalar_lea.vmem %s0, %s229
        %p231 = pneg %p53
        %p232 = pneg %p50
        %s233 = smul.u32 16, %s22
        %p234 = scmp.lt.s32.totalorder %s233, 31
        %s235 = scalar_select %p234, %s233, 31
        %s236 = smul.addr %s235, 8
        %s237 = scalar_lea.vmem %s1, %s236
        %p238 = pneg %p79
        %p239 = pneg %p76
        %s240 = smul.u32 8, %s23
        %p241 = scmp.lt.s32.totalorder %s240, 7
        %s242 = scalar_select %p241, %s240, 7
        %s243 = smul.addr %s242, 8
        %s244 = scalar_lea.vmem %s2, %s243
        %p245 = pneg %p105
        %p246 = pneg %p102
        %s247 = smul.u32 8, %s23
        %p248 = scmp.lt.s32.totalorder %s247, 7
        %s249 = scalar_select %p248, %s247, 7
        %s250 = scalar_lea.vmem %s3, %s249
        %p251 = pneg %p131
        %p252 = pneg %p128
        %p253 = pneg %p157
        %p254 = pneg %p154
        %s255 = sand.u32 %s144, 1
        %s256 = scalar_lea.sflag [#allocation3], %s255
        %s257 = sand.u32 %s144, 1
        %s258 = smul.addr %s257, 128
        %s259 = scalar_lea.vmem [#allocation2], %s258
        %s260 = smul.u32 16, %s22
        %p261 = scmp.lt.s32.totalorder %s23, 0
        %s262 = scalar_select %p261, %s23, 0
        %p263 = scmp.lt.s32.totalorder %s260, 31
        %s264 = scalar_select %p263, %s260, 31
        %s265 = smul.addr %s262, 32
        %s266 = sadd.s32 %s264, %s265
        %s267 = smul.addr %s266, 8
        %s268 = scalar_lea.vmem %s0, %s267
        %s269 = smul.u32 16, %s22
        %s270 = smul.u32 16, %s22
        %p271 = scmp.lt.s32.totalorder %s270, 31
        %s272 = scalar_select %p271, %s270, 31
        %s273 = smul.addr %s272, 8
        %s274 = scalar_lea.vmem %s1, %s273
        %s275 = smul.u32 16, %s22
        %s276 = smul.u32 8, %s23
        %p277 = scmp.lt.s32.totalorder %s276, 7
        %s278 = scalar_select %p277, %s276, 7
        %s279 = smul.addr %s278, 8
        %s280 = scalar_lea.vmem %s2, %s279
        %s281 = smul.u32 8, %s23
        %s282 = smul.u32 8, %s23
        %p283 = scmp.lt.s32.totalorder %s282, 7
        %s284 = scalar_select %p283, %s282, 7
        %s285 = scalar_lea.vmem %s3, %s284
        %s286 = smul.u32 8, %s23
        %s287 = smul.u32 16, %s22
        %v288 = vld [vmem:[%s274] sm:$0xff]
        %v289 = vld [vmem:[%s274 + $0x8] sm:$0xff]
        %v290 = vld [vmem:[%s274 + $0x10] sm:$0xff]
        %v291 = vld [vmem:[%s274 + $0x18] sm:$0xff]
        %v292 = vld [vmem:[%s274 + $0x20] sm:$0xff]
        %v293 = vld [vmem:[%s274 + $0x28] sm:$0xff]
        %v294 = vld [vmem:[%s274 + $0x30] sm:$0xff]
        %v295 = vld [vmem:[%s274 + $0x38] sm:$0xff]
        %v296 = vld [vmem:[%s274 + $0x40] sm:$0xff]
        %v297 = vld [vmem:[%s274 + $0x48] sm:$0xff]
        %v298 = vld [vmem:[%s274 + $0x50] sm:$0xff]
        %v299 = vld [vmem:[%s274 + $0x58] sm:$0xff]
        %v300 = vld [vmem:[%s274 + $0x60] sm:$0xff]
        %v301 = vld [vmem:[%s274 + $0x68] sm:$0xff]
        %v302 = vld [vmem:[%s274 + $0x70] sm:$0xff]
        %v303 = vld [vmem:[%s274 + $0x78] sm:$0xff]
        %v304 = vld [vmem:[%s280] sm:$0xff]
        %v305 = vld [vmem:[%s280 + $0x8] sm:$0xff]
        %v306 = vld [vmem:[%s280 + $0x10] sm:$0xff]
        %v307 = vld [vmem:[%s280 + $0x18] sm:$0xff]
        %v308 = vld [vmem:[%s280 + $0x20] sm:$0xff]
        %v309 = vld [vmem:[%s280 + $0x28] sm:$0xff]
        %v310 = vld [vmem:[%s280 + $0x30] sm:$0xff]
        %v311 = vld [vmem:[%s280 + $0x38] sm:$0xff]
        %v312 = vld [vmem:[%s280 + $0x40] sm:$0xff]
        %v313 = vld [vmem:[%s280 + $0x48] sm:$0xff]
        %v314 = vld [vmem:[%s280 + $0x50] sm:$0xff]
        %v315 = vld [vmem:[%s280 + $0x58] sm:$0xff]
        %v316 = vld [vmem:[%s280 + $0x60] sm:$0xff]
        %v317 = vld [vmem:[%s280 + $0x68] sm:$0xff]
        %v318 = vld [vmem:[%s280 + $0x70] sm:$0xff]
        %v319 = vld [vmem:[%s280 + $0x78] sm:$0xff]
        %v320 = vld [vmem:[%s280 + $0x80] sm:$0xff]
        %v321 = vld [vmem:[%s280 + $0x88] sm:$0xff]
        %v322 = vld [vmem:[%s280 + $0x90] sm:$0xff]
        %v323 = vld [vmem:[%s280 + $0x98] sm:$0xff]
        %v324 = vld [vmem:[%s280 + $0xa0] sm:$0xff]
        %v325 = vld [vmem:[%s280 + $0xa8] sm:$0xff]
        %v326 = vld [vmem:[%s280 + $0xb0] sm:$0xff]
        %v327 = vld [vmem:[%s280 + $0xb8] sm:$0xff]
        %v328 = vld [vmem:[%s280 + $0xc0] sm:$0xff]
        %v329 = vld [vmem:[%s280 + $0xc8] sm:$0xff]
        %v330 = vld [vmem:[%s280 + $0xd0] sm:$0xff]
        %v331 = vld [vmem:[%s280 + $0xd8] sm:$0xff]
        %v332 = vld [vmem:[%s280 + $0xe0] sm:$0xff]
        %v333 = vld [vmem:[%s280 + $0xe8] sm:$0xff]
        %v334 = vld [vmem:[%s280 + $0xf0] sm:$0xff]
        %v335 = vld [vmem:[%s280 + $0xf8] sm:$0xff]
        %v336 = vld [vmem:[%s280 + $0x100] sm:$0xff]
        %v337 = vld [vmem:[%s280 + $0x108] sm:$0xff]
        %v338 = vld [vmem:[%s280 + $0x110] sm:$0xff]
        %v339 = vld [vmem:[%s280 + $0x118] sm:$0xff]
        %v340 = vld [vmem:[%s280 + $0x120] sm:$0xff]
        %v341 = vld [vmem:[%s280 + $0x128] sm:$0xff]
        %v342 = vld [vmem:[%s280 + $0x130] sm:$0xff]
        %v343 = vld [vmem:[%s280 + $0x138] sm:$0xff]
        %v344 = vld [vmem:[%s280 + $0x140] sm:$0xff]
        %v345 = vld [vmem:[%s280 + $0x148] sm:$0xff]
        %v346 = vld [vmem:[%s280 + $0x150] sm:$0xff]
        %v347 = vld [vmem:[%s280 + $0x158] sm:$0xff]
        %v348 = vld [vmem:[%s280 + $0x160] sm:$0xff]
        %v349 = vld [vmem:[%s280 + $0x168] sm:$0xff]
        %v350 = vld [vmem:[%s280 + $0x170] sm:$0xff]
        %v351 = vld [vmem:[%s280 + $0x178] sm:$0xff]
        %v352 = vld [vmem:[%s280 + $0x180] sm:$0xff]
        %v353 = vld [vmem:[%s280 + $0x188] sm:$0xff]
        %v354 = vld [vmem:[%s280 + $0x190] sm:$0xff]
        %v355 = vld [vmem:[%s280 + $0x198] sm:$0xff]
        %v356 = vld [vmem:[%s280 + $0x1a0] sm:$0xff]
        %v357 = vld [vmem:[%s280 + $0x1a8] sm:$0xff]
        %v358 = vld [vmem:[%s280 + $0x1b0] sm:$0xff]
        %v359 = vld [vmem:[%s280 + $0x1b8] sm:$0xff]
        %v360 = vld [vmem:[%s280 + $0x1c0] sm:$0xff]
        %v361 = vld [vmem:[%s280 + $0x1c8] sm:$0xff]
        %v362 = vld [vmem:[%s280 + $0x1d0] sm:$0xff]
        %v363 = vld [vmem:[%s280 + $0x1d8] sm:$0xff]
        %v364 = vld [vmem:[%s280 + $0x1e0] sm:$0xff]
        %v365 = vld [vmem:[%s280 + $0x1e8] sm:$0xff]
        %v366 = vld [vmem:[%s280 + $0x1f0] sm:$0xff]
        %v367 = vld [vmem:[%s280 + $0x1f8] sm:$0xff]
        %v368 = vld [vmem:[%s280 + $0x200] sm:$0xff]
        %v369 = vld [vmem:[%s280 + $0x208] sm:$0xff]
        %v370 = vld [vmem:[%s280 + $0x210] sm:$0xff]
        %v371 = vld [vmem:[%s280 + $0x218] sm:$0xff]
        %v372 = vld [vmem:[%s280 + $0x220] sm:$0xff]
        %v373 = vld [vmem:[%s280 + $0x228] sm:$0xff]
        %v374 = vld [vmem:[%s280 + $0x230] sm:$0xff]
        %v375 = vld [vmem:[%s280 + $0x238] sm:$0xff]
        %v376 = vld [vmem:[%s280 + $0x240] sm:$0xff]
        %v377 = vld [vmem:[%s280 + $0x248] sm:$0xff]
        %v378 = vld [vmem:[%s280 + $0x250] sm:$0xff]
        %v379 = vld [vmem:[%s280 + $0x258] sm:$0xff]
        %v380 = vld [vmem:[%s280 + $0x260] sm:$0xff]
        %v381 = vld [vmem:[%s280 + $0x268] sm:$0xff]
        %v382 = vld [vmem:[%s280 + $0x270] sm:$0xff]
        %v383 = vld [vmem:[%s280 + $0x278] sm:$0xff]
        %v384 = vld [vmem:[%s280 + $0x280] sm:$0xff]
        %v385 = vld [vmem:[%s280 + $0x288] sm:$0xff]
        %v386 = vld [vmem:[%s280 + $0x290] sm:$0xff]
        %v387 = vld [vmem:[%s280 + $0x298] sm:$0xff]
        %v388 = vld [vmem:[%s280 + $0x2a0] sm:$0xff]
        %v389 = vld [vmem:[%s280 + $0x2a8] sm:$0xff]
        %v390 = vld [vmem:[%s280 + $0x2b0] sm:$0xff]
        %v391 = vld [vmem:[%s280 + $0x2b8] sm:$0xff]
        %v392 = vld [vmem:[%s280 + $0x2c0] sm:$0xff]
        %v393 = vld [vmem:[%s280 + $0x2c8] sm:$0xff]
        %v394 = vld [vmem:[%s280 + $0x2d0] sm:$0xff]
        %v395 = vld [vmem:[%s280 + $0x2d8] sm:$0xff]
        %v396 = vld [vmem:[%s280 + $0x2e0] sm:$0xff]
        %v397 = vld [vmem:[%s280 + $0x2e8] sm:$0xff]
        %v398 = vld [vmem:[%s280 + $0x2f0] sm:$0xff]
        %v399 = vld [vmem:[%s280 + $0x2f8] sm:$0xff]
        %v400 = vld [vmem:[%s280 + $0x300] sm:$0xff]
        %v401 = vld [vmem:[%s280 + $0x308] sm:$0xff]
        %v402 = vld [vmem:[%s280 + $0x310] sm:$0xff]
        %v403 = vld [vmem:[%s280 + $0x318] sm:$0xff]
        %v404 = vld [vmem:[%s280 + $0x320] sm:$0xff]
        %v405 = vld [vmem:[%s280 + $0x328] sm:$0xff]
        %v406 = vld [vmem:[%s280 + $0x330] sm:$0xff]
        %v407 = vld [vmem:[%s280 + $0x338] sm:$0xff]
        %v408 = vld [vmem:[%s280 + $0x340] sm:$0xff]
        %v409 = vld [vmem:[%s280 + $0x348] sm:$0xff]
        %v410 = vld [vmem:[%s280 + $0x350] sm:$0xff]
        %v411 = vld [vmem:[%s280 + $0x358] sm:$0xff]
        %v412 = vld [vmem:[%s280 + $0x360] sm:$0xff]
        %v413 = vld [vmem:[%s280 + $0x368] sm:$0xff]
        %v414 = vld [vmem:[%s280 + $0x370] sm:$0xff]
        %v415 = vld [vmem:[%s280 + $0x378] sm:$0xff]
        %v416 = vld [vmem:[%s280 + $0x380] sm:$0xff]
        %v417 = vld [vmem:[%s280 + $0x388] sm:$0xff]
        %v418 = vld [vmem:[%s280 + $0x390] sm:$0xff]
        %v419 = vld [vmem:[%s280 + $0x398] sm:$0xff]
        %v420 = vld [vmem:[%s280 + $0x3a0] sm:$0xff]
        %v421 = vld [vmem:[%s280 + $0x3a8] sm:$0xff]
        %v422 = vld [vmem:[%s280 + $0x3b0] sm:$0xff]
        %v423 = vld [vmem:[%s280 + $0x3b8] sm:$0xff]
        %v424 = vld [vmem:[%s280 + $0x3c0] sm:$0xff]
        %v425 = vld [vmem:[%s280 + $0x3c8] sm:$0xff]
        %v426 = vld [vmem:[%s280 + $0x3d0] sm:$0xff]
        %v427 = vld [vmem:[%s280 + $0x3d8] sm:$0xff]
        %v428 = vld [vmem:[%s280 + $0x3e0] sm:$0xff]
        %v429 = vld [vmem:[%s280 + $0x3e8] sm:$0xff]
        %v430 = vld [vmem:[%s280 + $0x3f0] sm:$0xff]
        %v431 = vld [vmem:[%s280 + $0x3f8] sm:$0xff]
        %v432 = vld [vmem:[%s285] sm:$0xff]
        %v434 = vperm.slane %v432, 0
        %v435 = vperm.slane %v432, 1
        %v436 = vperm.slane %v432, 2
        %v437 = vperm.slane %v432, 3
        %v438 = vperm.slane %v432, 4
        %v439 = vperm.slane %v432, 5
        %v440 = vperm.slane %v432, 6
        %v441 = vperm.slane %v432, 7
        %450 = vmatpush.msra.mxu0 %v424
        %451 = vmatpush.msra.mxu0 %v416
        %452 = vmatpush.msra.mxu0 %v408
        %453 = vmatpush.msra.mxu0 %v400
        %454 = vmatpush.msra.mxu0 %v392
        %455 = vmatpush.msra.mxu0 %v384
        %456 = vmatpush.msra.mxu0 %v376
        %457 = vmatpush.msra.mxu0 %v368
        %458 = vmatpush.msra.mxu0 %v360
        %459 = vmatpush.msra.mxu0 %v352
        %460 = vmatpush.msra.mxu0 %v344
        %461 = vmatpush.msra.mxu0 %v336
        %462 = vmatpush.msra.mxu0 %v328
        %463 = vmatpush.msra.mxu0 %v320
        %464 = vmatpush.msra.mxu0 %v312
        %465 = vmatpush.msra.mxu0 %v304
        %466 = vmatmul.f32.gmra.mxu0 %v288
        %v467 = vpop.f32.mrf.mxu0
        %v468 = vadd.f32 %v434, %v467
        %469 = vmatmul.f32.gmra.mxu0 %v289
        %v470 = vpop.f32.mrf.mxu0
        %v471 = vadd.f32 %v434, %v470
        %472 = vmatmul.f32.gmra.mxu0 %v290
        %v473 = vpop.f32.mrf.mxu0
        %v474 = vadd.f32 %v434, %v473
        %475 = vmatmul.f32.gmra.mxu0 %v291
        %v476 = vpop.f32.mrf.mxu0
        %v477 = vadd.f32 %v434, %v476
        %478 = vmatmul.f32.gmra.mxu0 %v292
        %v479 = vpop.f32.mrf.mxu0
        %v480 = vadd.f32 %v434, %v479
        %481 = vmatmul.f32.gmra.mxu0 %v293
        %v482 = vpop.f32.mrf.mxu0
        %v483 = vadd.f32 %v434, %v482
        %484 = vmatmul.f32.gmra.mxu0 %v294
        %v485 = vpop.f32.mrf.mxu0
        %v486 = vadd.f32 %v434, %v485
        %487 = vmatmul.f32.gmra.mxu0 %v295
        %v488 = vpop.f32.mrf.mxu0
        %v489 = vadd.f32 %v434, %v488
        %490 = vmatmul.f32.gmra.mxu0 %v296
        %v491 = vpop.f32.mrf.mxu0
        %v492 = vadd.f32 %v434, %v491
        %493 = vmatmul.f32.gmra.mxu0 %v297
        %v494 = vpop.f32.mrf.mxu0
        %v495 = vadd.f32 %v434, %v494
        %496 = vmatmul.f32.gmra.mxu0 %v298
        %v497 = vpop.f32.mrf.mxu0
        %v498 = vadd.f32 %v434, %v497
        %499 = vmatmul.f32.gmra.mxu0 %v299
        %v500 = vpop.f32.mrf.mxu0
        %v501 = vadd.f32 %v434, %v500
        %502 = vmatmul.f32.gmra.mxu0 %v300
        %v503 = vpop.f32.mrf.mxu0
        %v504 = vadd.f32 %v434, %v503
        %505 = vmatmul.f32.gmra.mxu0 %v301
        %v506 = vpop.f32.mrf.mxu0
        %v507 = vadd.f32 %v434, %v506
        %508 = vmatmul.f32.gmra.mxu0 %v302
        %v509 = vpop.f32.mrf.mxu0
        %v510 = vadd.f32 %v434, %v509
        %511 = vmatmul.f32.gmra.mxu0 %v303
        %v512 = vpop.f32.mrf.mxu0
        %v513 = vadd.f32 %v434, %v512
        %514 = vdwg.mxu0
        %515 = vmatpush.msra.mxu0 %v425
        %516 = vmatpush.msra.mxu0 %v417
        %517 = vmatpush.msra.mxu0 %v409
        %518 = vmatpush.msra.mxu0 %v401
        %519 = vmatpush.msra.mxu0 %v393
        %520 = vmatpush.msra.mxu0 %v385
        %521 = vmatpush.msra.mxu0 %v377
        %522 = vmatpush.msra.mxu0 %v369
        %523 = vmatpush.msra.mxu0 %v361
        %524 = vmatpush.msra.mxu0 %v353
        %525 = vmatpush.msra.mxu0 %v345
        %526 = vmatpush.msra.mxu0 %v337
        %527 = vmatpush.msra.mxu0 %v329
        %528 = vmatpush.msra.mxu0 %v321
        %529 = vmatpush.msra.mxu0 %v313
        %530 = vmatpush.msra.mxu0 %v305
        %531 = vmatmul.f32.gmra.mxu0 %v288
        %v532 = vpop.f32.mrf.mxu0
        %v533 = vadd.f32 %v435, %v532
        %534 = vmatmul.f32.gmra.mxu0 %v289
        %v535 = vpop.f32.mrf.mxu0
        %v536 = vadd.f32 %v435, %v535
        %537 = vmatmul.f32.gmra.mxu0 %v290
        %v538 = vpop.f32.mrf.mxu0
        %v539 = vadd.f32 %v435, %v538
        %540 = vmatmul.f32.gmra.mxu0 %v291
        %v541 = vpop.f32.mrf.mxu0
        %v542 = vadd.f32 %v435, %v541
        %543 = vmatmul.f32.gmra.mxu0 %v292
        %v544 = vpop.f32.mrf.mxu0
        %v545 = vadd.f32 %v435, %v544
        %546 = vmatmul.f32.gmra.mxu0 %v293
        %v547 = vpop.f32.mrf.mxu0
        %v548 = vadd.f32 %v435, %v547
        %549 = vmatmul.f32.gmra.mxu0 %v294
        %v550 = vpop.f32.mrf.mxu0
        %v551 = vadd.f32 %v435, %v550
        %552 = vmatmul.f32.gmra.mxu0 %v295
        %v553 = vpop.f32.mrf.mxu0
        %v554 = vadd.f32 %v435, %v553
        %555 = vmatmul.f32.gmra.mxu0 %v296
        %v556 = vpop.f32.mrf.mxu0
        %v557 = vadd.f32 %v435, %v556
        %558 = vmatmul.f32.gmra.mxu0 %v297
        %v559 = vpop.f32.mrf.mxu0
        %v560 = vadd.f32 %v435, %v559
        %561 = vmatmul.f32.gmra.mxu0 %v298
        %v562 = vpop.f32.mrf.mxu0
        %v563 = vadd.f32 %v435, %v562
        %564 = vmatmul.f32.gmra.mxu0 %v299
        %v565 = vpop.f32.mrf.mxu0
        %v566 = vadd.f32 %v435, %v565
        %567 = vmatmul.f32.gmra.mxu0 %v300
        %v568 = vpop.f32.mrf.mxu0
        %v569 = vadd.f32 %v435, %v568
        %570 = vmatmul.f32.gmra.mxu0 %v301
        %v571 = vpop.f32.mrf.mxu0
        %v572 = vadd.f32 %v435, %v571
        %573 = vmatmul.f32.gmra.mxu0 %v302
        %v574 = vpop.f32.mrf.mxu0
        %v575 = vadd.f32 %v435, %v574
        %576 = vmatmul.f32.gmra.mxu0 %v303
        %v577 = vpop.f32.mrf.mxu0
        %v578 = vadd.f32 %v435, %v577
        %579 = vdwg.mxu0
        %580 = vmatpush.msra.mxu0 %v426
        %581 = vmatpush.msra.mxu0 %v418
        %582 = vmatpush.msra.mxu0 %v410
        %583 = vmatpush.msra.mxu0 %v402
        %584 = vmatpush.msra.mxu0 %v394
        %585 = vmatpush.msra.mxu0 %v386
        %586 = vmatpush.msra.mxu0 %v378
        %587 = vmatpush.msra.mxu0 %v370
        %588 = vmatpush.msra.mxu0 %v362
        %589 = vmatpush.msra.mxu0 %v354
        %590 = vmatpush.msra.mxu0 %v346
        %591 = vmatpush.msra.mxu0 %v338
        %592 = vmatpush.msra.mxu0 %v330
        %593 = vmatpush.msra.mxu0 %v322
        %594 = vmatpush.msra.mxu0 %v314
        %595 = vmatpush.msra.mxu0 %v306
        %596 = vmatmul.f32.gmra.mxu0 %v288
        %v597 = vpop.f32.mrf.mxu0
        %v598 = vadd.f32 %v436, %v597
        %599 = vmatmul.f32.gmra.mxu0 %v289
        %v600 = vpop.f32.mrf.mxu0
        %v601 = vadd.f32 %v436, %v600
        %602 = vmatmul.f32.gmra.mxu0 %v290
        %v603 = vpop.f32.mrf.mxu0
        %v604 = vadd.f32 %v436, %v603
        %605 = vmatmul.f32.gmra.mxu0 %v291
        %v606 = vpop.f32.mrf.mxu0
        %v607 = vadd.f32 %v436, %v606
        %608 = vmatmul.f32.gmra.mxu0 %v292
        %v609 = vpop.f32.mrf.mxu0
        %v610 = vadd.f32 %v436, %v609
        %611 = vmatmul.f32.gmra.mxu0 %v293
        %v612 = vpop.f32.mrf.mxu0
        %v613 = vadd.f32 %v436, %v612
        %614 = vmatmul.f32.gmra.mxu0 %v294
        %v615 = vpop.f32.mrf.mxu0
        %v616 = vadd.f32 %v436, %v615
        %617 = vmatmul.f32.gmra.mxu0 %v295
        %v618 = vpop.f32.mrf.mxu0
        %v619 = vadd.f32 %v436, %v618
        %620 = vmatmul.f32.gmra.mxu0 %v296
        %v621 = vpop.f32.mrf.mxu0
        %v622 = vadd.f32 %v436, %v621
        %623 = vmatmul.f32.gmra.mxu0 %v297
        %v624 = vpop.f32.mrf.mxu0
        %v625 = vadd.f32 %v436, %v624
        %626 = vmatmul.f32.gmra.mxu0 %v298
        %v627 = vpop.f32.mrf.mxu0
        %v628 = vadd.f32 %v436, %v627
        %629 = vmatmul.f32.gmra.mxu0 %v299
        %v630 = vpop.f32.mrf.mxu0
        %v631 = vadd.f32 %v436, %v630
        %632 = vmatmul.f32.gmra.mxu0 %v300
        %v633 = vpop.f32.mrf.mxu0
        %v634 = vadd.f32 %v436, %v633
        %635 = vmatmul.f32.gmra.mxu0 %v301
        %v636 = vpop.f32.mrf.mxu0
        %v637 = vadd.f32 %v436, %v636
        %638 = vmatmul.f32.gmra.mxu0 %v302
        %v639 = vpop.f32.mrf.mxu0
        %v640 = vadd.f32 %v436, %v639
        %641 = vmatmul.f32.gmra.mxu0 %v303
        %v642 = vpop.f32.mrf.mxu0
        %v643 = vadd.f32 %v436, %v642
        %644 = vdwg.mxu0
        %645 = vmatpush.msra.mxu0 %v427
        %646 = vmatpush.msra.mxu0 %v419
        %647 = vmatpush.msra.mxu0 %v411
        %648 = vmatpush.msra.mxu0 %v403
        %649 = vmatpush.msra.mxu0 %v395
        %650 = vmatpush.msra.mxu0 %v387
        %651 = vmatpush.msra.mxu0 %v379
        %652 = vmatpush.msra.mxu0 %v371
        %653 = vmatpush.msra.mxu0 %v363
        %654 = vmatpush.msra.mxu0 %v355
        %655 = vmatpush.msra.mxu0 %v347
        %656 = vmatpush.msra.mxu0 %v339
        %657 = vmatpush.msra.mxu0 %v331
        %658 = vmatpush.msra.mxu0 %v323
        %659 = vmatpush.msra.mxu0 %v315
        %660 = vmatpush.msra.mxu0 %v307
        %661 = vmatmul.f32.gmra.mxu0 %v288
        %v662 = vpop.f32.mrf.mxu0
        %v663 = vadd.f32 %v437, %v662
        %664 = vmatmul.f32.gmra.mxu0 %v289
        %v665 = vpop.f32.mrf.mxu0
        %v666 = vadd.f32 %v437, %v665
        %667 = vmatmul.f32.gmra.mxu0 %v290
        %v668 = vpop.f32.mrf.mxu0
        %v669 = vadd.f32 %v437, %v668
        %670 = vmatmul.f32.gmra.mxu0 %v291
        %v671 = vpop.f32.mrf.mxu0
        %v672 = vadd.f32 %v437, %v671
        %673 = vmatmul.f32.gmra.mxu0 %v292
        %v674 = vpop.f32.mrf.mxu0
        %v675 = vadd.f32 %v437, %v674
        %676 = vmatmul.f32.gmra.mxu0 %v293
        %v677 = vpop.f32.mrf.mxu0
        %v678 = vadd.f32 %v437, %v677
        %679 = vmatmul.f32.gmra.mxu0 %v294
        %v680 = vpop.f32.mrf.mxu0
        %v681 = vadd.f32 %v437, %v680
        %682 = vmatmul.f32.gmra.mxu0 %v295
        %v683 = vpop.f32.mrf.mxu0
        %v684 = vadd.f32 %v437, %v683
        %685 = vmatmul.f32.gmra.mxu0 %v296
        %v686 = vpop.f32.mrf.mxu0
        %v687 = vadd.f32 %v437, %v686
        %688 = vmatmul.f32.gmra.mxu0 %v297
        %v689 = vpop.f32.mrf.mxu0
        %v690 = vadd.f32 %v437, %v689
        %691 = vmatmul.f32.gmra.mxu0 %v298
        %v692 = vpop.f32.mrf.mxu0
        %v693 = vadd.f32 %v437, %v692
        %694 = vmatmul.f32.gmra.mxu0 %v299
        %v695 = vpop.f32.mrf.mxu0
        %v696 = vadd.f32 %v437, %v695
        %697 = vmatmul.f32.gmra.mxu0 %v300
        %v698 = vpop.f32.mrf.mxu0
        %v699 = vadd.f32 %v437, %v698
        %700 = vmatmul.f32.gmra.mxu0 %v301
        %v701 = vpop.f32.mrf.mxu0
        %v702 = vadd.f32 %v437, %v701
        %703 = vmatmul.f32.gmra.mxu0 %v302
        %v704 = vpop.f32.mrf.mxu0
        %v705 = vadd.f32 %v437, %v704
        %706 = vmatmul.f32.gmra.mxu0 %v303
        %v707 = vpop.f32.mrf.mxu0
        %v708 = vadd.f32 %v437, %v707
        %709 = vdwg.mxu0
        %710 = vmatpush.msra.mxu0 %v428
        %711 = vmatpush.msra.mxu0 %v420
        %712 = vmatpush.msra.mxu0 %v412
        %713 = vmatpush.msra.mxu0 %v404
        %714 = vmatpush.msra.mxu0 %v396
        %715 = vmatpush.msra.mxu0 %v388
        %716 = vmatpush.msra.mxu0 %v380
        %717 = vmatpush.msra.mxu0 %v372
        %718 = vmatpush.msra.mxu0 %v364
        %719 = vmatpush.msra.mxu0 %v356
        %720 = vmatpush.msra.mxu0 %v348
        %721 = vmatpush.msra.mxu0 %v340
        %722 = vmatpush.msra.mxu0 %v332
        %723 = vmatpush.msra.mxu0 %v324
        %724 = vmatpush.msra.mxu0 %v316
        %725 = vmatpush.msra.mxu0 %v308
        %726 = vmatmul.f32.gmra.mxu0 %v288
        %v727 = vpop.f32.mrf.mxu0
        %v728 = vadd.f32 %v438, %v727
        %729 = vmatmul.f32.gmra.mxu0 %v289
        %v730 = vpop.f32.mrf.mxu0
        %v731 = vadd.f32 %v438, %v730
        %732 = vmatmul.f32.gmra.mxu0 %v290
        %v733 = vpop.f32.mrf.mxu0
        %v734 = vadd.f32 %v438, %v733
        %735 = vmatmul.f32.gmra.mxu0 %v291
        %v736 = vpop.f32.mrf.mxu0
        %v737 = vadd.f32 %v438, %v736
        %738 = vmatmul.f32.gmra.mxu0 %v292
        %v739 = vpop.f32.mrf.mxu0
        %v740 = vadd.f32 %v438, %v739
        %741 = vmatmul.f32.gmra.mxu0 %v293
        %v742 = vpop.f32.mrf.mxu0
        %v743 = vadd.f32 %v438, %v742
        %744 = vmatmul.f32.gmra.mxu0 %v294
        %v745 = vpop.f32.mrf.mxu0
        %v746 = vadd.f32 %v438, %v745
        %747 = vmatmul.f32.gmra.mxu0 %v295
        %v748 = vpop.f32.mrf.mxu0
        %v749 = vadd.f32 %v438, %v748
        %750 = vmatmul.f32.gmra.mxu0 %v296
        %v751 = vpop.f32.mrf.mxu0
        %v752 = vadd.f32 %v438, %v751
        %753 = vmatmul.f32.gmra.mxu0 %v297
        %v754 = vpop.f32.mrf.mxu0
        %v755 = vadd.f32 %v438, %v754
        %756 = vmatmul.f32.gmra.mxu0 %v298
        %v757 = vpop.f32.mrf.mxu0
        %v758 = vadd.f32 %v438, %v757
        %759 = vmatmul.f32.gmra.mxu0 %v299
        %v760 = vpop.f32.mrf.mxu0
        %v761 = vadd.f32 %v438, %v760
        %762 = vmatmul.f32.gmra.mxu0 %v300
        %v763 = vpop.f32.mrf.mxu0
        %v764 = vadd.f32 %v438, %v763
        %765 = vmatmul.f32.gmra.mxu0 %v301
        %v766 = vpop.f32.mrf.mxu0
        %v767 = vadd.f32 %v438, %v766
        %768 = vmatmul.f32.gmra.mxu0 %v302
        %v769 = vpop.f32.mrf.mxu0
        %v770 = vadd.f32 %v438, %v769
        %771 = vmatmul.f32.gmra.mxu0 %v303
        %v772 = vpop.f32.mrf.mxu0
        %v773 = vadd.f32 %v438, %v772
        %774 = vdwg.mxu0
        %775 = vmatpush.msra.mxu0 %v429
        %776 = vmatpush.msra.mxu0 %v421
        %777 = vmatpush.msra.mxu0 %v413
        %778 = vmatpush.msra.mxu0 %v405
        %779 = vmatpush.msra.mxu0 %v397
        %780 = vmatpush.msra.mxu0 %v389
        %781 = vmatpush.msra.mxu0 %v381
        %782 = vmatpush.msra.mxu0 %v373
        %783 = vmatpush.msra.mxu0 %v365
        %784 = vmatpush.msra.mxu0 %v357
        %785 = vmatpush.msra.mxu0 %v349
        %786 = vmatpush.msra.mxu0 %v341
        %787 = vmatpush.msra.mxu0 %v333
        %788 = vmatpush.msra.mxu0 %v325
        %789 = vmatpush.msra.mxu0 %v317
        %790 = vmatpush.msra.mxu0 %v309
        %791 = vmatmul.f32.gmra.mxu0 %v288
        %v792 = vpop.f32.mrf.mxu0
        %v793 = vadd.f32 %v439, %v792
        %794 = vmatmul.f32.gmra.mxu0 %v289
        %v795 = vpop.f32.mrf.mxu0
        %v796 = vadd.f32 %v439, %v795
        %797 = vmatmul.f32.gmra.mxu0 %v290
        %v798 = vpop.f32.mrf.mxu0
        %v799 = vadd.f32 %v439, %v798
        %800 = vmatmul.f32.gmra.mxu0 %v291
        %v801 = vpop.f32.mrf.mxu0
        %v802 = vadd.f32 %v439, %v801
        %803 = vmatmul.f32.gmra.mxu0 %v292
        %v804 = vpop.f32.mrf.mxu0
        %v805 = vadd.f32 %v439, %v804
        %806 = vmatmul.f32.gmra.mxu0 %v293
        %v807 = vpop.f32.mrf.mxu0
        %v808 = vadd.f32 %v439, %v807
        %809 = vmatmul.f32.gmra.mxu0 %v294
        %v810 = vpop.f32.mrf.mxu0
        %v811 = vadd.f32 %v439, %v810
        %812 = vmatmul.f32.gmra.mxu0 %v295
        %v813 = vpop.f32.mrf.mxu0
        %v814 = vadd.f32 %v439, %v813
        %815 = vmatmul.f32.gmra.mxu0 %v296
        %v816 = vpop.f32.mrf.mxu0
        %v817 = vadd.f32 %v439, %v816
        %818 = vmatmul.f32.gmra.mxu0 %v297
        %v819 = vpop.f32.mrf.mxu0
        %v820 = vadd.f32 %v439, %v819
        %821 = vmatmul.f32.gmra.mxu0 %v298
        %v822 = vpop.f32.mrf.mxu0
        %v823 = vadd.f32 %v439, %v822
        %824 = vmatmul.f32.gmra.mxu0 %v299
        %v825 = vpop.f32.mrf.mxu0
        %v826 = vadd.f32 %v439, %v825
        %827 = vmatmul.f32.gmra.mxu0 %v300
        %v828 = vpop.f32.mrf.mxu0
        %v829 = vadd.f32 %v439, %v828
        %830 = vmatmul.f32.gmra.mxu0 %v301
        %v831 = vpop.f32.mrf.mxu0
        %v832 = vadd.f32 %v439, %v831
        %833 = vmatmul.f32.gmra.mxu0 %v302
        %v834 = vpop.f32.mrf.mxu0
        %v835 = vadd.f32 %v439, %v834
        %836 = vmatmul.f32.gmra.mxu0 %v303
        %v837 = vpop.f32.mrf.mxu0
        %v838 = vadd.f32 %v439, %v837
        %839 = vdwg.mxu0
        %840 = vmatpush.msra.mxu0 %v430
        %841 = vmatpush.msra.mxu0 %v422
        %842 = vmatpush.msra.mxu0 %v414
        %843 = vmatpush.msra.mxu0 %v406
        %844 = vmatpush.msra.mxu0 %v398
        %845 = vmatpush.msra.mxu0 %v390
        %846 = vmatpush.msra.mxu0 %v382
        %847 = vmatpush.msra.mxu0 %v374
        %848 = vmatpush.msra.mxu0 %v366
        %849 = vmatpush.msra.mxu0 %v358
        %850 = vmatpush.msra.mxu0 %v350
        %851 = vmatpush.msra.mxu0 %v342
        %852 = vmatpush.msra.mxu0 %v334
        %853 = vmatpush.msra.mxu0 %v326
        %854 = vmatpush.msra.mxu0 %v318
        %855 = vmatpush.msra.mxu0 %v310
        %856 = vmatmul.f32.gmra.mxu0 %v288
        %v857 = vpop.f32.mrf.mxu0
        %v858 = vadd.f32 %v440, %v857
        %859 = vmatmul.f32.gmra.mxu0 %v289
        %v860 = vpop.f32.mrf.mxu0
        %v861 = vadd.f32 %v440, %v860
        %862 = vmatmul.f32.gmra.mxu0 %v290
        %v863 = vpop.f32.mrf.mxu0
        %v864 = vadd.f32 %v440, %v863
        %865 = vmatmul.f32.gmra.mxu0 %v291
        %v866 = vpop.f32.mrf.mxu0
        %v867 = vadd.f32 %v440, %v866
        %868 = vmatmul.f32.gmra.mxu0 %v292
        %v869 = vpop.f32.mrf.mxu0
        %v870 = vadd.f32 %v440, %v869
        %871 = vmatmul.f32.gmra.mxu0 %v293
        %v872 = vpop.f32.mrf.mxu0
        %v873 = vadd.f32 %v440, %v872
        %874 = vmatmul.f32.gmra.mxu0 %v294
        %v875 = vpop.f32.mrf.mxu0
        %v876 = vadd.f32 %v440, %v875
        %877 = vmatmul.f32.gmra.mxu0 %v295
        %v878 = vpop.f32.mrf.mxu0
        %v879 = vadd.f32 %v440, %v878
        %880 = vmatmul.f32.gmra.mxu0 %v296
        %v881 = vpop.f32.mrf.mxu0
        %v882 = vadd.f32 %v440, %v881
        %883 = vmatmul.f32.gmra.mxu0 %v297
        %v884 = vpop.f32.mrf.mxu0
        %v885 = vadd.f32 %v440, %v884
        %886 = vmatmul.f32.gmra.mxu0 %v298
        %v887 = vpop.f32.mrf.mxu0
        %v888 = vadd.f32 %v440, %v887
        %889 = vmatmul.f32.gmra.mxu0 %v299
        %v890 = vpop.f32.mrf.mxu0
        %v891 = vadd.f32 %v440, %v890
        %892 = vmatmul.f32.gmra.mxu0 %v300
        %v893 = vpop.f32.mrf.mxu0
        %v894 = vadd.f32 %v440, %v893
        %895 = vmatmul.f32.gmra.mxu0 %v301
        %v896 = vpop.f32.mrf.mxu0
        %v897 = vadd.f32 %v440, %v896
        %898 = vmatmul.f32.gmra.mxu0 %v302
        %v899 = vpop.f32.mrf.mxu0
        %v900 = vadd.f32 %v440, %v899
        %901 = vmatmul.f32.gmra.mxu0 %v303
        %v902 = vpop.f32.mrf.mxu0
        %v903 = vadd.f32 %v440, %v902
        %904 = vdwg.mxu0
        %905 = vmatpush.msra.mxu0 %v431
        %906 = vmatpush.msra.mxu0 %v423
        %907 = vmatpush.msra.mxu0 %v415
        %908 = vmatpush.msra.mxu0 %v407
        %909 = vmatpush.msra.mxu0 %v399
        %910 = vmatpush.msra.mxu0 %v391
        %911 = vmatpush.msra.mxu0 %v383
        %912 = vmatpush.msra.mxu0 %v375
        %913 = vmatpush.msra.mxu0 %v367
        %914 = vmatpush.msra.mxu0 %v359
        %915 = vmatpush.msra.mxu0 %v351
        %916 = vmatpush.msra.mxu0 %v343
        %917 = vmatpush.msra.mxu0 %v335
        %918 = vmatpush.msra.mxu0 %v327
        %919 = vmatpush.msra.mxu0 %v319
        %920 = vmatpush.msra.mxu0 %v311
        %921 = vmatmul.f32.gmra.mxu0 %v288
        %v922 = vpop.f32.mrf.mxu0
        %v923 = vadd.f32 %v441, %v922
        %924 = vmatmul.f32.gmra.mxu0 %v289
        %v925 = vpop.f32.mrf.mxu0
        %v926 = vadd.f32 %v441, %v925
        %927 = vmatmul.f32.gmra.mxu0 %v290
        %v928 = vpop.f32.mrf.mxu0
        %v929 = vadd.f32 %v441, %v928
        %930 = vmatmul.f32.gmra.mxu0 %v291
        %v931 = vpop.f32.mrf.mxu0
        %v932 = vadd.f32 %v441, %v931
        %933 = vmatmul.f32.gmra.mxu0 %v292
        %v934 = vpop.f32.mrf.mxu0
        %v935 = vadd.f32 %v441, %v934
        %936 = vmatmul.f32.gmra.mxu0 %v293
        %v937 = vpop.f32.mrf.mxu0
        %v938 = vadd.f32 %v441, %v937
        %939 = vmatmul.f32.gmra.mxu0 %v294
        %v940 = vpop.f32.mrf.mxu0
        %v941 = vadd.f32 %v441, %v940
        %942 = vmatmul.f32.gmra.mxu0 %v295
        %v943 = vpop.f32.mrf.mxu0
        %v944 = vadd.f32 %v441, %v943
        %945 = vmatmul.f32.gmra.mxu0 %v296
        %v946 = vpop.f32.mrf.mxu0
        %v947 = vadd.f32 %v441, %v946
        %948 = vmatmul.f32.gmra.mxu0 %v297
        %v949 = vpop.f32.mrf.mxu0
        %v950 = vadd.f32 %v441, %v949
        %951 = vmatmul.f32.gmra.mxu0 %v298
        %v952 = vpop.f32.mrf.mxu0
        %v953 = vadd.f32 %v441, %v952
        %954 = vmatmul.f32.gmra.mxu0 %v299
        %v955 = vpop.f32.mrf.mxu0
        %v956 = vadd.f32 %v441, %v955
        %957 = vmatmul.f32.gmra.mxu0 %v300
        %v958 = vpop.f32.mrf.mxu0
        %v959 = vadd.f32 %v441, %v958
        %960 = vmatmul.f32.gmra.mxu0 %v301
        %v961 = vpop.f32.mrf.mxu0
        %v962 = vadd.f32 %v441, %v961
        %963 = vmatmul.f32.gmra.mxu0 %v302
        %v964 = vpop.f32.mrf.mxu0
        %v965 = vadd.f32 %v441, %v964
        %966 = vmatmul.f32.gmra.mxu0 %v303
        %v967 = vpop.f32.mrf.mxu0
        %v968 = vadd.f32 %v441, %v967
        %969 = vdwg.mxu0
        %v970 = vld [vmem:[%s268] sm:$0xff]
        %v971 = vld [vmem:[%s268 + $0x8] sm:$0xff]
        %v972 = vld [vmem:[%s268 + $0x10] sm:$0xff]
        %v973 = vld [vmem:[%s268 + $0x18] sm:$0xff]
        %v974 = vld [vmem:[%s268 + $0x20] sm:$0xff]
        %v975 = vld [vmem:[%s268 + $0x28] sm:$0xff]
        %v976 = vld [vmem:[%s268 + $0x30] sm:$0xff]
        %v977 = vld [vmem:[%s268 + $0x38] sm:$0xff]
        %v978 = vld [vmem:[%s268 + $0x40] sm:$0xff]
        %v979 = vld [vmem:[%s268 + $0x48] sm:$0xff]
        %v980 = vld [vmem:[%s268 + $0x50] sm:$0xff]
        %v981 = vld [vmem:[%s268 + $0x58] sm:$0xff]
        %v982 = vld [vmem:[%s268 + $0x60] sm:$0xff]
        %v983 = vld [vmem:[%s268 + $0x68] sm:$0xff]
        %v984 = vld [vmem:[%s268 + $0x70] sm:$0xff]
        %v985 = vld [vmem:[%s268 + $0x78] sm:$0xff]
        %987 = vset.pattern.permute.xlu0 0
        %988 = vperm.xlu0 %987, %v970
        %v989 = vpop.permute.xlu0 %988
        %992 = vset.pattern.permute.xlu0 0
        %993 = vperm.xlu0 %992, %v971
        %v994 = vpop.permute.xlu0 %993
        %997 = vset.pattern.permute.xlu0 0
        %998 = vperm.xlu0 %997, %v972
        %v999 = vpop.permute.xlu0 %998
        %1002 = vset.pattern.permute.xlu0 0
        %1003 = vperm.xlu0 %1002, %v973
        %v1004 = vpop.permute.xlu0 %1003
        %1007 = vset.pattern.permute.xlu0 0
        %1008 = vperm.xlu0 %1007, %v974
        %v1009 = vpop.permute.xlu0 %1008
        %1012 = vset.pattern.permute.xlu0 0
        %1013 = vperm.xlu0 %1012, %v975
        %v1014 = vpop.permute.xlu0 %1013
        %1017 = vset.pattern.permute.xlu0 0
        %1018 = vperm.xlu0 %1017, %v976
        %v1019 = vpop.permute.xlu0 %1018
        %1022 = vset.pattern.permute.xlu0 0
        %1023 = vperm.xlu0 %1022, %v977
        %v1024 = vpop.permute.xlu0 %1023
        %1027 = vset.pattern.permute.xlu0 0
        %1028 = vperm.xlu0 %1027, %v978
        %v1029 = vpop.permute.xlu0 %1028
        %1032 = vset.pattern.permute.xlu0 0
        %1033 = vperm.xlu0 %1032, %v979
        %v1034 = vpop.permute.xlu0 %1033
        %1037 = vset.pattern.permute.xlu0 0
        %1038 = vperm.xlu0 %1037, %v980
        %v1039 = vpop.permute.xlu0 %1038
        %1042 = vset.pattern.permute.xlu0 0
        %1043 = vperm.xlu0 %1042, %v981
        %v1044 = vpop.permute.xlu0 %1043
        %1047 = vset.pattern.permute.xlu0 0
        %1048 = vperm.xlu0 %1047, %v982
        %v1049 = vpop.permute.xlu0 %1048
        %1052 = vset.pattern.permute.xlu0 0
        %1053 = vperm.xlu0 %1052, %v983
        %v1054 = vpop.permute.xlu0 %1053
        %1057 = vset.pattern.permute.xlu0 0
        %1058 = vperm.xlu0 %1057, %v984
        %v1059 = vpop.permute.xlu0 %1058
        %1062 = vset.pattern.permute.xlu0 0
        %1063 = vperm.xlu0 %1062, %v985
        %v1064 = vpop.permute.xlu0 %1063
        %v1066 = vmul.f32 %v989, %v468
        %v1067 = vmul.f32 %v994, %v471
        %v1068 = vmul.f32 %v999, %v474
        %v1069 = vmul.f32 %v1004, %v477
        %v1070 = vmul.f32 %v1009, %v480
        %v1071 = vmul.f32 %v1014, %v483
        %v1072 = vmul.f32 %v1019, %v486
        %v1073 = vmul.f32 %v1024, %v489
        %v1074 = vmul.f32 %v1029, %v492
        %v1075 = vmul.f32 %v1034, %v495
        %v1076 = vmul.f32 %v1039, %v498
        %v1077 = vmul.f32 %v1044, %v501
        %v1078 = vmul.f32 %v1049, %v504
        %v1079 = vmul.f32 %v1054, %v507
        %v1080 = vmul.f32 %v1059, %v510
        %v1081 = vmul.f32 %v1064, %v513
        %1082 = vset.pattern.permute.xlu0 1
        %1083 = vperm.xlu0 %1082, %v970
        %v1084 = vpop.permute.xlu0 %1083
        %1086 = vset.pattern.permute.xlu0 1
        %1087 = vperm.xlu0 %1086, %v971
        %v1088 = vpop.permute.xlu0 %1087
        %1090 = vset.pattern.permute.xlu0 1
        %1091 = vperm.xlu0 %1090, %v972
        %v1092 = vpop.permute.xlu0 %1091
        %1094 = vset.pattern.permute.xlu0 1
        %1095 = vperm.xlu0 %1094, %v973
        %v1096 = vpop.permute.xlu0 %1095
        %1098 = vset.pattern.permute.xlu0 1
        %1099 = vperm.xlu0 %1098, %v974
        %v1100 = vpop.permute.xlu0 %1099
        %1102 = vset.pattern.permute.xlu0 1
        %1103 = vperm.xlu0 %1102, %v975
        %v1104 = vpop.permute.xlu0 %1103
        %1106 = vset.pattern.permute.xlu0 1
        %1107 = vperm.xlu0 %1106, %v976
        %v1108 = vpop.permute.xlu0 %1107
        %1110 = vset.pattern.permute.xlu0 1
        %1111 = vperm.xlu0 %1110, %v977
        %v1112 = vpop.permute.xlu0 %1111
        %1114 = vset.pattern.permute.xlu0 1
        %1115 = vperm.xlu0 %1114, %v978
        %v1116 = vpop.permute.xlu0 %1115
        %1118 = vset.pattern.permute.xlu0 1
        %1119 = vperm.xlu0 %1118, %v979
        %v1120 = vpop.permute.xlu0 %1119
        %1122 = vset.pattern.permute.xlu0 1
        %1123 = vperm.xlu0 %1122, %v980
        %v1124 = vpop.permute.xlu0 %1123
        %1126 = vset.pattern.permute.xlu0 1
        %1127 = vperm.xlu0 %1126, %v981
        %v1128 = vpop.permute.xlu0 %1127
        %1130 = vset.pattern.permute.xlu0 1
        %1131 = vperm.xlu0 %1130, %v982
        %v1132 = vpop.permute.xlu0 %1131
        %1134 = vset.pattern.permute.xlu0 1
        %1135 = vperm.xlu0 %1134, %v983
        %v1136 = vpop.permute.xlu0 %1135
        %1138 = vset.pattern.permute.xlu0 1
        %1139 = vperm.xlu0 %1138, %v984
        %v1140 = vpop.permute.xlu0 %1139
        %1142 = vset.pattern.permute.xlu0 1
        %1143 = vperm.xlu0 %1142, %v985
        %v1144 = vpop.permute.xlu0 %1143
        %v1146 = vmul.f32 %v1084, %v533
        %v1147 = vmul.f32 %v1088, %v536
        %v1148 = vmul.f32 %v1092, %v539
        %v1149 = vmul.f32 %v1096, %v542
        %v1150 = vmul.f32 %v1100, %v545
        %v1151 = vmul.f32 %v1104, %v548
        %v1152 = vmul.f32 %v1108, %v551
        %v1153 = vmul.f32 %v1112, %v554
        %v1154 = vmul.f32 %v1116, %v557
        %v1155 = vmul.f32 %v1120, %v560
        %v1156 = vmul.f32 %v1124, %v563
        %v1157 = vmul.f32 %v1128, %v566
        %v1158 = vmul.f32 %v1132, %v569
        %v1159 = vmul.f32 %v1136, %v572
        %v1160 = vmul.f32 %v1140, %v575
        %v1161 = vmul.f32 %v1144, %v578
        %v1162 = vadd.f32 %v1066, %v1146
        %v1163 = vadd.f32 %v1067, %v1147
        %v1164 = vadd.f32 %v1068, %v1148
        %v1165 = vadd.f32 %v1069, %v1149
        %v1166 = vadd.f32 %v1070, %v1150
        %v1167 = vadd.f32 %v1071, %v1151
        %v1168 = vadd.f32 %v1072, %v1152
        %v1169 = vadd.f32 %v1073, %v1153
        %v1170 = vadd.f32 %v1074, %v1154
        %v1171 = vadd.f32 %v1075, %v1155
        %v1172 = vadd.f32 %v1076, %v1156
        %v1173 = vadd.f32 %v1077, %v1157
        %v1174 = vadd.f32 %v1078, %v1158
        %v1175 = vadd.f32 %v1079, %v1159
        %v1176 = vadd.f32 %v1080, %v1160
        %v1177 = vadd.f32 %v1081, %v1161
        %1178 = vset.pattern.permute.xlu0 2
        %1179 = vperm.xlu0 %1178, %v970
        %v1180 = vpop.permute.xlu0 %1179
        %1182 = vset.pattern.permute.xlu0 2
        %1183 = vperm.xlu0 %1182, %v971
        %v1184 = vpop.permute.xlu0 %1183
        %1186 = vset.pattern.permute.xlu0 2
        %1187 = vperm.xlu0 %1186, %v972
        %v1188 = vpop.permute.xlu0 %1187
        %1190 = vset.pattern.permute.xlu0 2
        %1191 = vperm.xlu0 %1190, %v973
        %v1192 = vpop.permute.xlu0 %1191
        %1194 = vset.pattern.permute.xlu0 2
        %1195 = vperm.xlu0 %1194, %v974
        %v1196 = vpop.permute.xlu0 %1195
        %1198 = vset.pattern.permute.xlu0 2
        %1199 = vperm.xlu0 %1198, %v975
        %v1200 = vpop.permute.xlu0 %1199
        %1202 = vset.pattern.permute.xlu0 2
        %1203 = vperm.xlu0 %1202, %v976
        %v1204 = vpop.permute.xlu0 %1203
        %1206 = vset.pattern.permute.xlu0 2
        %1207 = vperm.xlu0 %1206, %v977
        %v1208 = vpop.permute.xlu0 %1207
        %1210 = vset.pattern.permute.xlu0 2
        %1211 = vperm.xlu0 %1210, %v978
        %v1212 = vpop.permute.xlu0 %1211
        %1214 = vset.pattern.permute.xlu0 2
        %1215 = vperm.xlu0 %1214, %v979
        %v1216 = vpop.permute.xlu0 %1215
        %1218 = vset.pattern.permute.xlu0 2
        %1219 = vperm.xlu0 %1218, %v980
        %v1220 = vpop.permute.xlu0 %1219
        %1222 = vset.pattern.permute.xlu0 2
        %1223 = vperm.xlu0 %1222, %v981
        %v1224 = vpop.permute.xlu0 %1223
        %1226 = vset.pattern.permute.xlu0 2
        %1227 = vperm.xlu0 %1226, %v982
        %v1228 = vpop.permute.xlu0 %1227
        %1230 = vset.pattern.permute.xlu0 2
        %1231 = vperm.xlu0 %1230, %v983
        %v1232 = vpop.permute.xlu0 %1231
        %1234 = vset.pattern.permute.xlu0 2
        %1235 = vperm.xlu0 %1234, %v984
        %v1236 = vpop.permute.xlu0 %1235
        %1238 = vset.pattern.permute.xlu0 2
        %1239 = vperm.xlu0 %1238, %v985
        %v1240 = vpop.permute.xlu0 %1239
        %v1242 = vmul.f32 %v1180, %v598
        %v1243 = vmul.f32 %v1184, %v601
        %v1244 = vmul.f32 %v1188, %v604
        %v1245 = vmul.f32 %v1192, %v607
        %v1246 = vmul.f32 %v1196, %v610
        %v1247 = vmul.f32 %v1200, %v613
        %v1248 = vmul.f32 %v1204, %v616
        %v1249 = vmul.f32 %v1208, %v619
        %v1250 = vmul.f32 %v1212, %v622
        %v1251 = vmul.f32 %v1216, %v625
        %v1252 = vmul.f32 %v1220, %v628
        %v1253 = vmul.f32 %v1224, %v631
        %v1254 = vmul.f32 %v1228, %v634
        %v1255 = vmul.f32 %v1232, %v637
        %v1256 = vmul.f32 %v1236, %v640
        %v1257 = vmul.f32 %v1240, %v643
        %v1258 = vadd.f32 %v1162, %v1242
        %v1259 = vadd.f32 %v1163, %v1243
        %v1260 = vadd.f32 %v1164, %v1244
        %v1261 = vadd.f32 %v1165, %v1245
        %v1262 = vadd.f32 %v1166, %v1246
        %v1263 = vadd.f32 %v1167, %v1247
        %v1264 = vadd.f32 %v1168, %v1248
        %v1265 = vadd.f32 %v1169, %v1249
        %v1266 = vadd.f32 %v1170, %v1250
        %v1267 = vadd.f32 %v1171, %v1251
        %v1268 = vadd.f32 %v1172, %v1252
        %v1269 = vadd.f32 %v1173, %v1253
        %v1270 = vadd.f32 %v1174, %v1254
        %v1271 = vadd.f32 %v1175, %v1255
        %v1272 = vadd.f32 %v1176, %v1256
        %v1273 = vadd.f32 %v1177, %v1257
        %1274 = vset.pattern.permute.xlu0 3
        %1275 = vperm.xlu0 %1274, %v970
        %v1276 = vpop.permute.xlu0 %1275
        %1278 = vset.pattern.permute.xlu0 3
        %1279 = vperm.xlu0 %1278, %v971
        %v1280 = vpop.permute.xlu0 %1279
        %1282 = vset.pattern.permute.xlu0 3
        %1283 = vperm.xlu0 %1282, %v972
        %v1284 = vpop.permute.xlu0 %1283
        %1286 = vset.pattern.permute.xlu0 3
        %1287 = vperm.xlu0 %1286, %v973
        %v1288 = vpop.permute.xlu0 %1287
        %1290 = vset.pattern.permute.xlu0 3
        %1291 = vperm.xlu0 %1290, %v974
        %v1292 = vpop.permute.xlu0 %1291
        %1294 = vset.pattern.permute.xlu0 3
        %1295 = vperm.xlu0 %1294, %v975
        %v1296 = vpop.permute.xlu0 %1295
        %1298 = vset.pattern.permute.xlu0 3
        %1299 = vperm.xlu0 %1298, %v976
        %v1300 = vpop.permute.xlu0 %1299
        %1302 = vset.pattern.permute.xlu0 3
        %1303 = vperm.xlu0 %1302, %v977
        %v1304 = vpop.permute.xlu0 %1303
        %1306 = vset.pattern.permute.xlu0 3
        %1307 = vperm.xlu0 %1306, %v978
        %v1308 = vpop.permute.xlu0 %1307
        %1310 = vset.pattern.permute.xlu0 3
        %1311 = vperm.xlu0 %1310, %v979
        %v1312 = vpop.permute.xlu0 %1311
        %1314 = vset.pattern.permute.xlu0 3
        %1315 = vperm.xlu0 %1314, %v980
        %v1316 = vpop.permute.xlu0 %1315
        %1318 = vset.pattern.permute.xlu0 3
        %1319 = vperm.xlu0 %1318, %v981
        %v1320 = vpop.permute.xlu0 %1319
        %1322 = vset.pattern.permute.xlu0 3
        %1323 = vperm.xlu0 %1322, %v982
        %v1324 = vpop.permute.xlu0 %1323
        %1326 = vset.pattern.permute.xlu0 3
        %1327 = vperm.xlu0 %1326, %v983
        %v1328 = vpop.permute.xlu0 %1327
        %1330 = vset.pattern.permute.xlu0 3
        %1331 = vperm.xlu0 %1330, %v984
        %v1332 = vpop.permute.xlu0 %1331
        %1334 = vset.pattern.permute.xlu0 3
        %1335 = vperm.xlu0 %1334, %v985
        %v1336 = vpop.permute.xlu0 %1335
        %v1338 = vmul.f32 %v1276, %v663
        %v1339 = vmul.f32 %v1280, %v666
        %v1340 = vmul.f32 %v1284, %v669
        %v1341 = vmul.f32 %v1288, %v672
        %v1342 = vmul.f32 %v1292, %v675
        %v1343 = vmul.f32 %v1296, %v678
        %v1344 = vmul.f32 %v1300, %v681
        %v1345 = vmul.f32 %v1304, %v684
        %v1346 = vmul.f32 %v1308, %v687
        %v1347 = vmul.f32 %v1312, %v690
        %v1348 = vmul.f32 %v1316, %v693
        %v1349 = vmul.f32 %v1320, %v696
        %v1350 = vmul.f32 %v1324, %v699
        %v1351 = vmul.f32 %v1328, %v702
        %v1352 = vmul.f32 %v1332, %v705
        %v1353 = vmul.f32 %v1336, %v708
        %v1354 = vadd.f32 %v1258, %v1338
        %v1355 = vadd.f32 %v1259, %v1339
        %v1356 = vadd.f32 %v1260, %v1340
        %v1357 = vadd.f32 %v1261, %v1341
        %v1358 = vadd.f32 %v1262, %v1342
        %v1359 = vadd.f32 %v1263, %v1343
        %v1360 = vadd.f32 %v1264, %v1344
        %v1361 = vadd.f32 %v1265, %v1345
        %v1362 = vadd.f32 %v1266, %v1346
        %v1363 = vadd.f32 %v1267, %v1347
        %v1364 = vadd.f32 %v1268, %v1348
        %v1365 = vadd.f32 %v1269, %v1349
        %v1366 = vadd.f32 %v1270, %v1350
        %v1367 = vadd.f32 %v1271, %v1351
        %v1368 = vadd.f32 %v1272, %v1352
        %v1369 = vadd.f32 %v1273, %v1353
        %1370 = vset.pattern.permute.xlu0 4
        %1371 = vperm.xlu0 %1370, %v970
        %v1372 = vpop.permute.xlu0 %1371
        %1374 = vset.pattern.permute.xlu0 4
        %1375 = vperm.xlu0 %1374, %v971
        %v1376 = vpop.permute.xlu0 %1375
        %1378 = vset.pattern.permute.xlu0 4
        %1379 = vperm.xlu0 %1378, %v972
        %v1380 = vpop.permute.xlu0 %1379
        %1382 = vset.pattern.permute.xlu0 4
        %1383 = vperm.xlu0 %1382, %v973
        %v1384 = vpop.permute.xlu0 %1383
        %1386 = vset.pattern.permute.xlu0 4
        %1387 = vperm.xlu0 %1386, %v974
        %v1388 = vpop.permute.xlu0 %1387
        %1390 = vset.pattern.permute.xlu0 4
        %1391 = vperm.xlu0 %1390, %v975
        %v1392 = vpop.permute.xlu0 %1391
        %1394 = vset.pattern.permute.xlu0 4
        %1395 = vperm.xlu0 %1394, %v976
        %v1396 = vpop.permute.xlu0 %1395
        %1398 = vset.pattern.permute.xlu0 4
        %1399 = vperm.xlu0 %1398, %v977
        %v1400 = vpop.permute.xlu0 %1399
        %1402 = vset.pattern.permute.xlu0 4
        %1403 = vperm.xlu0 %1402, %v978
        %v1404 = vpop.permute.xlu0 %1403
        %1406 = vset.pattern.permute.xlu0 4
        %1407 = vperm.xlu0 %1406, %v979
        %v1408 = vpop.permute.xlu0 %1407
        %1410 = vset.pattern.permute.xlu0 4
        %1411 = vperm.xlu0 %1410, %v980
        %v1412 = vpop.permute.xlu0 %1411
        %1414 = vset.pattern.permute.xlu0 4
        %1415 = vperm.xlu0 %1414, %v981
        %v1416 = vpop.permute.xlu0 %1415
        %1418 = vset.pattern.permute.xlu0 4
        %1419 = vperm.xlu0 %1418, %v982
        %v1420 = vpop.permute.xlu0 %1419
        %1422 = vset.pattern.permute.xlu0 4
        %1423 = vperm.xlu0 %1422, %v983
        %v1424 = vpop.permute.xlu0 %1423
        %1426 = vset.pattern.permute.xlu0 4
        %1427 = vperm.xlu0 %1426, %v984
        %v1428 = vpop.permute.xlu0 %1427
        %1430 = vset.pattern.permute.xlu0 4
        %1431 = vperm.xlu0 %1430, %v985
        %v1432 = vpop.permute.xlu0 %1431
        %v1434 = vmul.f32 %v1372, %v728
        %v1435 = vmul.f32 %v1376, %v731
        %v1436 = vmul.f32 %v1380, %v734
        %v1437 = vmul.f32 %v1384, %v737
        %v1438 = vmul.f32 %v1388, %v740
        %v1439 = vmul.f32 %v1392, %v743
        %v1440 = vmul.f32 %v1396, %v746
        %v1441 = vmul.f32 %v1400, %v749
        %v1442 = vmul.f32 %v1404, %v752
        %v1443 = vmul.f32 %v1408, %v755
        %v1444 = vmul.f32 %v1412, %v758
        %v1445 = vmul.f32 %v1416, %v761
        %v1446 = vmul.f32 %v1420, %v764
        %v1447 = vmul.f32 %v1424, %v767
        %v1448 = vmul.f32 %v1428, %v770
        %v1449 = vmul.f32 %v1432, %v773
        %v1450 = vadd.f32 %v1354, %v1434
        %v1451 = vadd.f32 %v1355, %v1435
        %v1452 = vadd.f32 %v1356, %v1436
        %v1453 = vadd.f32 %v1357, %v1437
        %v1454 = vadd.f32 %v1358, %v1438
        %v1455 = vadd.f32 %v1359, %v1439
        %v1456 = vadd.f32 %v1360, %v1440
        %v1457 = vadd.f32 %v1361, %v1441
        %v1458 = vadd.f32 %v1362, %v1442
        %v1459 = vadd.f32 %v1363, %v1443
        %v1460 = vadd.f32 %v1364, %v1444
        %v1461 = vadd.f32 %v1365, %v1445
        %v1462 = vadd.f32 %v1366, %v1446
        %v1463 = vadd.f32 %v1367, %v1447
        %v1464 = vadd.f32 %v1368, %v1448
        %v1465 = vadd.f32 %v1369, %v1449
        %1466 = vset.pattern.permute.xlu0 5
        %1467 = vperm.xlu0 %1466, %v970
        %v1468 = vpop.permute.xlu0 %1467
        %1470 = vset.pattern.permute.xlu0 5
        %1471 = vperm.xlu0 %1470, %v971
        %v1472 = vpop.permute.xlu0 %1471
        %1474 = vset.pattern.permute.xlu0 5
        %1475 = vperm.xlu0 %1474, %v972
        %v1476 = vpop.permute.xlu0 %1475
        %1478 = vset.pattern.permute.xlu0 5
        %1479 = vperm.xlu0 %1478, %v973
        %v1480 = vpop.permute.xlu0 %1479
        %1482 = vset.pattern.permute.xlu0 5
        %1483 = vperm.xlu0 %1482, %v974
        %v1484 = vpop.permute.xlu0 %1483
        %1486 = vset.pattern.permute.xlu0 5
        %1487 = vperm.xlu0 %1486, %v975
        %v1488 = vpop.permute.xlu0 %1487
        %1490 = vset.pattern.permute.xlu0 5
        %1491 = vperm.xlu0 %1490, %v976
        %v1492 = vpop.permute.xlu0 %1491
        %1494 = vset.pattern.permute.xlu0 5
        %1495 = vperm.xlu0 %1494, %v977
        %v1496 = vpop.permute.xlu0 %1495
        %1498 = vset.pattern.permute.xlu0 5
        %1499 = vperm.xlu0 %1498, %v978
        %v1500 = vpop.permute.xlu0 %1499
        %1502 = vset.pattern.permute.xlu0 5
        %1503 = vperm.xlu0 %1502, %v979
        %v1504 = vpop.permute.xlu0 %1503
        %1506 = vset.pattern.permute.xlu0 5
        %1507 = vperm.xlu0 %1506, %v980
        %v1508 = vpop.permute.xlu0 %1507
        %1510 = vset.pattern.permute.xlu0 5
        %1511 = vperm.xlu0 %1510, %v981
        %v1512 = vpop.permute.xlu0 %1511
        %1514 = vset.pattern.permute.xlu0 5
        %1515 = vperm.xlu0 %1514, %v982
        %v1516 = vpop.permute.xlu0 %1515
        %1518 = vset.pattern.permute.xlu0 5
        %1519 = vperm.xlu0 %1518, %v983
        %v1520 = vpop.permute.xlu0 %1519
        %1522 = vset.pattern.permute.xlu0 5
        %1523 = vperm.xlu0 %1522, %v984
        %v1524 = vpop.permute.xlu0 %1523
        %1526 = vset.pattern.permute.xlu0 5
        %1527 = vperm.xlu0 %1526, %v985
        %v1528 = vpop.permute.xlu0 %1527
        %v1530 = vmul.f32 %v1468, %v793
        %v1531 = vmul.f32 %v1472, %v796
        %v1532 = vmul.f32 %v1476, %v799
        %v1533 = vmul.f32 %v1480, %v802
        %v1534 = vmul.f32 %v1484, %v805
        %v1535 = vmul.f32 %v1488, %v808
        %v1536 = vmul.f32 %v1492, %v811
        %v1537 = vmul.f32 %v1496, %v814
        %v1538 = vmul.f32 %v1500, %v817
        %v1539 = vmul.f32 %v1504, %v820
        %v1540 = vmul.f32 %v1508, %v823
        %v1541 = vmul.f32 %v1512, %v826
        %v1542 = vmul.f32 %v1516, %v829
        %v1543 = vmul.f32 %v1520, %v832
        %v1544 = vmul.f32 %v1524, %v835
        %v1545 = vmul.f32 %v1528, %v838
        %v1546 = vadd.f32 %v1450, %v1530
        %v1547 = vadd.f32 %v1451, %v1531
        %v1548 = vadd.f32 %v1452, %v1532
        %v1549 = vadd.f32 %v1453, %v1533
        %v1550 = vadd.f32 %v1454, %v1534
        %v1551 = vadd.f32 %v1455, %v1535
        %v1552 = vadd.f32 %v1456, %v1536
        %v1553 = vadd.f32 %v1457, %v1537
        %v1554 = vadd.f32 %v1458, %v1538
        %v1555 = vadd.f32 %v1459, %v1539
        %v1556 = vadd.f32 %v1460, %v1540
        %v1557 = vadd.f32 %v1461, %v1541
        %v1558 = vadd.f32 %v1462, %v1542
        %v1559 = vadd.f32 %v1463, %v1543
        %v1560 = vadd.f32 %v1464, %v1544
        %v1561 = vadd.f32 %v1465, %v1545
        %1562 = vset.pattern.permute.xlu0 6
        %1563 = vperm.xlu0 %1562, %v970
        %v1564 = vpop.permute.xlu0 %1563
        %1566 = vset.pattern.permute.xlu0 6
        %1567 = vperm.xlu0 %1566, %v971
        %v1568 = vpop.permute.xlu0 %1567
        %1570 = vset.pattern.permute.xlu0 6
        %1571 = vperm.xlu0 %1570, %v972
        %v1572 = vpop.permute.xlu0 %1571
        %1574 = vset.pattern.permute.xlu0 6
        %1575 = vperm.xlu0 %1574, %v973
        %v1576 = vpop.permute.xlu0 %1575
        %1578 = vset.pattern.permute.xlu0 6
        %1579 = vperm.xlu0 %1578, %v974
        %v1580 = vpop.permute.xlu0 %1579
        %1582 = vset.pattern.permute.xlu0 6
        %1583 = vperm.xlu0 %1582, %v975
        %v1584 = vpop.permute.xlu0 %1583
        %1586 = vset.pattern.permute.xlu0 6
        %1587 = vperm.xlu0 %1586, %v976
        %v1588 = vpop.permute.xlu0 %1587
        %1590 = vset.pattern.permute.xlu0 6
        %1591 = vperm.xlu0 %1590, %v977
        %v1592 = vpop.permute.xlu0 %1591
        %1594 = vset.pattern.permute.xlu0 6
        %1595 = vperm.xlu0 %1594, %v978
        %v1596 = vpop.permute.xlu0 %1595
        %1598 = vset.pattern.permute.xlu0 6
        %1599 = vperm.xlu0 %1598, %v979
        %v1600 = vpop.permute.xlu0 %1599
        %1602 = vset.pattern.permute.xlu0 6
        %1603 = vperm.xlu0 %1602, %v980
        %v1604 = vpop.permute.xlu0 %1603
        %1606 = vset.pattern.permute.xlu0 6
        %1607 = vperm.xlu0 %1606, %v981
        %v1608 = vpop.permute.xlu0 %1607
        %1610 = vset.pattern.permute.xlu0 6
        %1611 = vperm.xlu0 %1610, %v982
        %v1612 = vpop.permute.xlu0 %1611
        %1614 = vset.pattern.permute.xlu0 6
        %1615 = vperm.xlu0 %1614, %v983
        %v1616 = vpop.permute.xlu0 %1615
        %1618 = vset.pattern.permute.xlu0 6
        %1619 = vperm.xlu0 %1618, %v984
        %v1620 = vpop.permute.xlu0 %1619
        %1622 = vset.pattern.permute.xlu0 6
        %1623 = vperm.xlu0 %1622, %v985
        %v1624 = vpop.permute.xlu0 %1623
        %v1626 = vmul.f32 %v1564, %v858
        %v1627 = vmul.f32 %v1568, %v861
        %v1628 = vmul.f32 %v1572, %v864
        %v1629 = vmul.f32 %v1576, %v867
        %v1630 = vmul.f32 %v1580, %v870
        %v1631 = vmul.f32 %v1584, %v873
        %v1632 = vmul.f32 %v1588, %v876
        %v1633 = vmul.f32 %v1592, %v879
        %v1634 = vmul.f32 %v1596, %v882
        %v1635 = vmul.f32 %v1600, %v885
        %v1636 = vmul.f32 %v1604, %v888
        %v1637 = vmul.f32 %v1608, %v891
        %v1638 = vmul.f32 %v1612, %v894
        %v1639 = vmul.f32 %v1616, %v897
        %v1640 = vmul.f32 %v1620, %v900
        %v1641 = vmul.f32 %v1624, %v903
        %v1642 = vadd.f32 %v1546, %v1626
        %v1643 = vadd.f32 %v1547, %v1627
        %v1644 = vadd.f32 %v1548, %v1628
        %v1645 = vadd.f32 %v1549, %v1629
        %v1646 = vadd.f32 %v1550, %v1630
        %v1647 = vadd.f32 %v1551, %v1631
        %v1648 = vadd.f32 %v1552, %v1632
        %v1649 = vadd.f32 %v1553, %v1633
        %v1650 = vadd.f32 %v1554, %v1634
        %v1651 = vadd.f32 %v1555, %v1635
        %v1652 = vadd.f32 %v1556, %v1636
        %v1653 = vadd.f32 %v1557, %v1637
        %v1654 = vadd.f32 %v1558, %v1638
        %v1655 = vadd.f32 %v1559, %v1639
        %v1656 = vadd.f32 %v1560, %v1640
        %v1657 = vadd.f32 %v1561, %v1641
        %1658 = vset.pattern.permute.xlu0 7
        %1659 = vperm.xlu0 %1658, %v970
        %v1660 = vpop.permute.xlu0 %1659
        %1662 = vset.pattern.permute.xlu0 7
        %1663 = vperm.xlu0 %1662, %v971
        %v1664 = vpop.permute.xlu0 %1663
        %1666 = vset.pattern.permute.xlu0 7
        %1667 = vperm.xlu0 %1666, %v972
        %v1668 = vpop.permute.xlu0 %1667
        %1670 = vset.pattern.permute.xlu0 7
        %1671 = vperm.xlu0 %1670, %v973
        %v1672 = vpop.permute.xlu0 %1671
        %1674 = vset.pattern.permute.xlu0 7
        %1675 = vperm.xlu0 %1674, %v974
        %v1676 = vpop.permute.xlu0 %1675
        %1678 = vset.pattern.permute.xlu0 7
        %1679 = vperm.xlu0 %1678, %v975
        %v1680 = vpop.permute.xlu0 %1679
        %1682 = vset.pattern.permute.xlu0 7
        %1683 = vperm.xlu0 %1682, %v976
        %v1684 = vpop.permute.xlu0 %1683
        %1686 = vset.pattern.permute.xlu0 7
        %1687 = vperm.xlu0 %1686, %v977
        %v1688 = vpop.permute.xlu0 %1687
        %1690 = vset.pattern.permute.xlu0 7
        %1691 = vperm.xlu0 %1690, %v978
        %v1692 = vpop.permute.xlu0 %1691
        %1694 = vset.pattern.permute.xlu0 7
        %1695 = vperm.xlu0 %1694, %v979
        %v1696 = vpop.permute.xlu0 %1695
        %1698 = vset.pattern.permute.xlu0 7
        %1699 = vperm.xlu0 %1698, %v980
        %v1700 = vpop.permute.xlu0 %1699
        %1702 = vset.pattern.permute.xlu0 7
        %1703 = vperm.xlu0 %1702, %v981
        %v1704 = vpop.permute.xlu0 %1703
        %1706 = vset.pattern.permute.xlu0 7
        %1707 = vperm.xlu0 %1706, %v982
        %v1708 = vpop.permute.xlu0 %1707
        %1710 = vset.pattern.permute.xlu0 7
        %1711 = vperm.xlu0 %1710, %v983
        %v1712 = vpop.permute.xlu0 %1711
        %1714 = vset.pattern.permute.xlu0 7
        %1715 = vperm.xlu0 %1714, %v984
        %v1716 = vpop.permute.xlu0 %1715
        %1718 = vset.pattern.permute.xlu0 7
        %1719 = vperm.xlu0 %1718, %v985
        %v1720 = vpop.permute.xlu0 %1719
        %v1722 = vmul.f32 %v1660, %v923
        %v1723 = vmul.f32 %v1664, %v926
        %v1724 = vmul.f32 %v1668, %v929
        %v1725 = vmul.f32 %v1672, %v932
        %v1726 = vmul.f32 %v1676, %v935
        %v1727 = vmul.f32 %v1680, %v938
        %v1728 = vmul.f32 %v1684, %v941
        %v1729 = vmul.f32 %v1688, %v944
        %v1730 = vmul.f32 %v1692, %v947
        %v1731 = vmul.f32 %v1696, %v950
        %v1732 = vmul.f32 %v1700, %v953
        %v1733 = vmul.f32 %v1704, %v956
        %v1734 = vmul.f32 %v1708, %v959
        %v1735 = vmul.f32 %v1712, %v962
        %v1736 = vmul.f32 %v1716, %v965
        %v1737 = vmul.f32 %v1720, %v968
        %v1738 = vadd.f32 %v1642, %v1722
        %v1739 = vadd.f32 %v1643, %v1723
        %v1740 = vadd.f32 %v1644, %v1724
        %v1741 = vadd.f32 %v1645, %v1725
        %v1742 = vadd.f32 %v1646, %v1726
        %v1743 = vadd.f32 %v1647, %v1727
        %v1744 = vadd.f32 %v1648, %v1728
        %v1745 = vadd.f32 %v1649, %v1729
        %v1746 = vadd.f32 %v1650, %v1730
        %v1747 = vadd.f32 %v1651, %v1731
        %v1748 = vadd.f32 %v1652, %v1732
        %v1749 = vadd.f32 %v1653, %v1733
        %v1750 = vadd.f32 %v1654, %v1734
        %v1751 = vadd.f32 %v1655, %v1735
        %v1752 = vadd.f32 %v1656, %v1736
        %v1753 = vadd.f32 %v1657, %v1737
        %p1754 = scmp.eq.s32.totalorder %s23, 0
        // Predicated region
        $region37: #{moe_forward.1} parent=35 // pred_check
          %p1755 = pneg %p1754
        $region38: #{moe_forward.1} parent=35 // pred_check_branch
          %1757 = sbr.rel (%p1755) target = $region40
        $region39: #{moe_forward.1} parent=35 // pred_region
          %1758 = vst [vmem:[%s259] sm:$0xff] %v1738
          %1759 = vst [vmem:[%s259 + $0x8] sm:$0xff] %v1739
          %1760 = vst [vmem:[%s259 + $0x10] sm:$0xff] %v1740
          %1761 = vst [vmem:[%s259 + $0x18] sm:$0xff] %v1741
          %1762 = vst [vmem:[%s259 + $0x20] sm:$0xff] %v1742
          %1763 = vst [vmem:[%s259 + $0x28] sm:$0xff] %v1743
          %1764 = vst [vmem:[%s259 + $0x30] sm:$0xff] %v1744
          %1765 = vst [vmem:[%s259 + $0x38] sm:$0xff] %v1745
          %1766 = vst [vmem:[%s259 + $0x40] sm:$0xff] %v1746
          %1767 = vst [vmem:[%s259 + $0x48] sm:$0xff] %v1747
          %1768 = vst [vmem:[%s259 + $0x50] sm:$0xff] %v1748
          %1769 = vst [vmem:[%s259 + $0x58] sm:$0xff] %v1749
          %1770 = vst [vmem:[%s259 + $0x60] sm:$0xff] %v1750
          %1771 = vst [vmem:[%s259 + $0x68] sm:$0xff] %v1751
          %1772 = vst [vmem:[%s259 + $0x70] sm:$0xff] %v1752
          %1773 = vst [vmem:[%s259 + $0x78] sm:$0xff] %v1753
        $region40: #{moe_forward.1} parent=35 // pred_fallthru
          _
        %p1774 = scmp.gt.s32.totalorder %s23, 0
        // Predicated region
        $region41: #{moe_forward.1} parent=35 // pred_check
          %p1775 = pneg %p1774
        $region42: #{moe_forward.1} parent=35 // pred_check_branch
          %1777 = sbr.rel (%p1775) target = $region44
        $region43: #{moe_forward.1} parent=35 // pred_region
          %v1778 = vld [vmem:[%s259] sm:$0xff]
          %v1779 = vld [vmem:[%s259 + $0x8] sm:$0xff]
          %v1780 = vld [vmem:[%s259 + $0x10] sm:$0xff]
          %v1781 = vld [vmem:[%s259 + $0x18] sm:$0xff]
          %v1782 = vld [vmem:[%s259 + $0x20] sm:$0xff]
          %v1783 = vld [vmem:[%s259 + $0x28] sm:$0xff]
          %v1784 = vld [vmem:[%s259 + $0x30] sm:$0xff]
          %v1785 = vld [vmem:[%s259 + $0x38] sm:$0xff]
          %v1786 = vld [vmem:[%s259 + $0x40] sm:$0xff]
          %v1787 = vld [vmem:[%s259 + $0x48] sm:$0xff]
          %v1788 = vld [vmem:[%s259 + $0x50] sm:$0xff]
          %v1789 = vld [vmem:[%s259 + $0x58] sm:$0xff]
          %v1790 = vld [vmem:[%s259 + $0x60] sm:$0xff]
          %v1791 = vld [vmem:[%s259 + $0x68] sm:$0xff]
          %v1792 = vld [vmem:[%s259 + $0x70] sm:$0xff]
          %v1793 = vld [vmem:[%s259 + $0x78] sm:$0xff]
          %v1794 = vadd.f32 %v1778, %v1738
          %v1795 = vadd.f32 %v1779, %v1739
          %v1796 = vadd.f32 %v1780, %v1740
          %v1797 = vadd.f32 %v1781, %v1741
          %v1798 = vadd.f32 %v1782, %v1742
          %v1799 = vadd.f32 %v1783, %v1743
          %v1800 = vadd.f32 %v1784, %v1744
          %v1801 = vadd.f32 %v1785, %v1745
          %v1802 = vadd.f32 %v1786, %v1746
          %v1803 = vadd.f32 %v1787, %v1747
          %v1804 = vadd.f32 %v1788, %v1748
          %v1805 = vadd.f32 %v1789, %v1749
          %v1806 = vadd.f32 %v1790, %v1750
          %v1807 = vadd.f32 %v1791, %v1751
          %v1808 = vadd.f32 %v1792, %v1752
          %v1809 = vadd.f32 %v1793, %v1753
          %1810 = vst [vmem:[%s259] sm:$0xff] %v1794
          %1811 = vst [vmem:[%s259 + $0x8] sm:$0xff] %v1795
          %1812 = vst [vmem:[%s259 + $0x10] sm:$0xff] %v1796
          %1813 = vst [vmem:[%s259 + $0x18] sm:$0xff] %v1797
          %1814 = vst [vmem:[%s259 + $0x20] sm:$0xff] %v1798
          %1815 = vst [vmem:[%s259 + $0x28] sm:$0xff] %v1799
          %1816 = vst [vmem:[%s259 + $0x30] sm:$0xff] %v1800
          %1817 = vst [vmem:[%s259 + $0x38] sm:$0xff] %v1801
          %1818 = vst [vmem:[%s259 + $0x40] sm:$0xff] %v1802
          %1819 = vst [vmem:[%s259 + $0x48] sm:$0xff] %v1803
          %1820 = vst [vmem:[%s259 + $0x50] sm:$0xff] %v1804
          %1821 = vst [vmem:[%s259 + $0x58] sm:$0xff] %v1805
          %1822 = vst [vmem:[%s259 + $0x60] sm:$0xff] %v1806
          %1823 = vst [vmem:[%s259 + $0x68] sm:$0xff] %v1807
          %1824 = vst [vmem:[%s259 + $0x70] sm:$0xff] %v1808
          %1825 = vst [vmem:[%s259 + $0x78] sm:$0xff] %v1809
        $region44: #{moe_forward.1} parent=35 // pred_fallthru
          _
        %s1826 = sand.u32 %s144, 1
        %s1827 = scalar_lea.sflag [#allocation3], %s1826
        %s1828 = sand.u32 %s144, 1
        %s1829 = smul.addr %s1828, 128
        %s1830 = scalar_lea.vmem [#allocation2], %s1829
        // Predicated region
        $region45: #{moe_forward.1} parent=35 // pred_check
          %p1831 = pneg %p154
        $region46: #{moe_forward.1} parent=35 // pred_check_branch
          %1833 = sbr.rel (%p1831) target = $region48
        $region47: #{moe_forward.1} parent=35 // pred_region
          %s1834 = smul.u32 16, %s22
          %1836 = vsyncadd %s1827, 0
          %s1837 = smul.addr %s1834, 8
          %s1838 = scalar_lea.hbm %s4, %s1837
          %s1839 = sshll.u32 %s1830, 4
          %s1840 = int_to_ptr.vmem [resolvable:$true] %s1839
          %s1841 = sshll.u32 %s1838, 4
          %s1842 = int_to_ptr.hbm [resolvable:$true] %s1841
          %1847 = dma.vmem_to_hbm [thread:$0]  %s1840, 2048, %s1842, %s1827, 128, 128, 8
        $region48: #{moe_forward.1} parent=35 // pred_fallthru
          _
      $region36: #{moe_forward.1} parent=5 // pred_fallthru
        _
      %p1848 = scmp.le.s32.totalorder 2, %s13
      // Predicated region
      $region49: #{moe_forward.1} parent=5 // pred_check
        %p1849 = pneg %p1848
      $region50: #{moe_forward.1} parent=5 // pred_check_branch
        %1851 = sbr.rel (%p1849) target = $region52
      $region51: #{moe_forward.1} parent=5 // pred_region
        %s1852 = ssub.s32 %s13, 2
        // Predicated region
        $region53: #{moe_forward.1} parent=51 // pred_check
          %p1853 = pneg %p160
        $region54: #{moe_forward.1} parent=51 // pred_check_branch
          %1855 = sbr.rel (%p1853) target = $region56
        $region55: #{moe_forward.1} parent=51 // pred_region
          %s1856 = sand.u32 %s145, 1
          %s1857 = scalar_lea.sflag [#allocation3], %s1856
          %s1858 = sand.u32 %s145, 1
          %s1859 = smul.addr %s1858, 128
          %s1860 = scalar_lea.vmem [#allocation2], %s1859
          %1862 = dma.done %s1857, 2048
        $region56: #{moe_forward.1} parent=51 // pred_fallthru
          _
      $region52: #{moe_forward.1} parent=5 // pred_fallthru
        _
    $region6: #{moe_forward.1} parent=1 // loop_footer
      %s17 = sadd.s32 1, %s13
    $region7: #{moe_forward.1} parent=1 // loop_footer_branch
      %12 = sbr.rel target = $region3
    $region8: #{moe_forward.1} parent=1 // loop_exit
      _
    %1863 = vsyncpa [#allocation3], 1
    %s1864 = scalar_lea.sflag [#allocation3], 1
    %1865 = vsyncpa %s1864, 1

</llo_original>
